<compile_context>
chip_gen: v5e
topology: v5e:2x2
jax: 0.10.0
libtpu: 0.0.40
codegen_flags: <defaults>
</compile_context>

<pallas_src>
import jax
import jax.numpy as jnp
from jax.experimental import pallas as pl
from jax.experimental.pallas import tpu as pltpu


def music_lstm_kernel(x_ref,      # (T*Bp, D)          bf16, time-major, flattened
                      wih1_ref,   # (D, 4*H1)          bf16, lstm1 W_ih^T (gate-permuted)
                      b1_ref,     # (1, 4*H1)          f32,  lstm1 b_ih + b_hh (permuted)
                      wcomb_ref,  # (H1+H2, 4H1+4H2)   bf16, [[Whh1^T | Wih2^T],[0 | Whh2^T]]
                      b2_ref,     # (1, 4*H2)          f32,  lstm2 b_ih + b_hh (permuted)
                      wfc_ref,    # (H2, Op)           bf16, fc weight^T (lane-padded)
                      bfc_ref,    # (1, Op)            f32,  fc bias (lane-padded)
                      out_ref):   # (Bp, Op)           f32
    H1 = b1_ref.shape[1] // 4
    H2 = b2_ref.shape[1] // 4
    Bp = out_ref.shape[0]
    T = x_ref.shape[0] // Bp

    # Hoisted weight load (reused every unrolled step).
    wcomb = wcomb_ref[...]

    # Non-recurrent layer-1 input projection: one big MXU matmul (M = T*Bp),
    # bias folded in once (single broadcast, outside the recurrent loop).
    gates1_x = (jnp.dot(x_ref[...], wih1_ref[...],
                        preferred_element_type=jnp.float32)
                + b1_ref[...])                                    # (T*Bp, 4H1) f32

    # Hoisted layer-2 bias broadcast.
    b2b = jnp.broadcast_to(b2_ref[...], (Bp, 4 * H2))             # (Bp, 4H2) f32

    def gate_math(gates, c, H):
        # Gate column order (host-permuted): i, f, o, g.
        # sigmoid over one contiguous 3H slice, tanh over the H 'g' slice.
        sig = jax.nn.sigmoid(gates[:, :3 * H])
        g = jnp.tanh(gates[:, 3 * H:4 * H])
        i = sig[:, 0 * H:1 * H]
        f = sig[:, 1 * H:2 * H]
        o = sig[:, 2 * H:3 * H]
        c_new = f * c + i * g
        h_new = o * jnp.tanh(c_new)
        return h_new, c_new

    # Step 0 of layer 1: zero initial state -> recurrent term vanishes.
    h1, c1 = gate_math(gates1_x[0:Bp, :], jnp.zeros((Bp, H1), jnp.float32), H1)
    h2 = jnp.zeros((Bp, H2), jnp.float32)
    c2 = jnp.zeros((Bp, H2), jnp.float32)

    # T is small and static: full unroll (cross-step scheduling visibility).
    for t in range(T):
        # ONE fused MXU matmul per step producing BOTH
        #   comb[:, :4H1]  = h1_t @ Whh1^T          (layer-1 recurrent term, step t+1)
        #   comb[:, 4H1:]  = [h1_t|h2_{t-1}] @ W2   (layer-2 gates, step t)
        hh = jnp.concatenate([h1, h2], axis=-1).astype(jnp.bfloat16)   # (Bp, H1+H2)
        comb = jnp.dot(hh, wcomb, preferred_element_type=jnp.float32)  # (Bp, 4H1+4H2)

        # Layer 2, step t.
        g2 = comb[:, 4 * H1:] + b2b
        h2, c2 = gate_math(g2, c2, H2)
        # dropout2: identity in eval mode

        # Layer 1, step t+1 (skip after the last step).
        if t + 1 < T:
            g1 = gates1_x[(t + 1) * Bp:(t + 2) * Bp, :] + comb[:, :4 * H1]
            h1, c1 = gate_math(g1, c1, H1)
            # dropout1: identity in eval mode

    # fc on last-timestep h2; output is lane-dense (Op is a multiple of 128).
    out_ref[...] = (jnp.dot(h2.astype(jnp.bfloat16), wfc_ref[...],
                            preferred_element_type=jnp.float32)
                    + bfc_ref[...])


def music_lstm_forward(x_btd, params):
    """x_btd: (B, T, D) float32 (PyTorch batch_first layout)."""
    B, T, D = x_btd.shape
    (wih1, whh1, bih1, bhh1,
     wih2, whh2, bih2, bhh2,
     wfc, bfc) = params
    H1 = whh1.shape[1]
    H2 = whh2.shape[1]
    O = wfc.shape[0]

    SUB, LANE = 8, 128
    Bp = ((B + SUB - 1) // SUB) * SUB          # fill sublanes
    Op = ((O + LANE - 1) // LANE) * LANE       # lane-dense final store

    def perm_cols(w_t, H):
        # Column blocks [i|f|g|o] (PyTorch) -> [i|f|o|g] (sigmoid-contiguous).
        return jnp.concatenate(
            [w_t[:, :2 * H], w_t[:, 3 * H:4 * H], w_t[:, 2 * H:3 * H]], axis=-1)

    # Pad batch with zero sequences (discarded after the kernel), go time-major,
    # flatten (T, Bp, D) -> (T*Bp, D) so the layer-1 projection is one matmul.
    x_pad = jnp.pad(x_btd.astype(jnp.float32), ((0, Bp - B), (0, 0), (0, 0)))
    x_flat = jnp.transpose(x_pad, (1, 0, 2)).reshape(T * Bp, D).astype(jnp.bfloat16)

    wih1_p = perm_cols(wih1.T, H1).astype(jnp.bfloat16)                       # (D, 4H1)
    b1_p = perm_cols((bih1 + bhh1).reshape(1, -1), H1).astype(jnp.float32)    # (1, 4H1)

    # Combined recurrent weight: [[Whh1^T | Wih2^T], [0 | Whh2^T]]  (H1+H2, 4H1+4H2)
    w_top = jnp.concatenate([perm_cols(whh1.T, H1), perm_cols(wih2.T, H2)], axis=-1)
    w_bot = jnp.concatenate(
        [jnp.zeros((H2, 4 * H1), jnp.float32), perm_cols(whh2.T, H2)], axis=-1)
    wcomb = jnp.concatenate([w_top, w_bot], axis=0).astype(jnp.bfloat16)

    b2_p = perm_cols((bih2 + bhh2).reshape(1, -1), H2).astype(jnp.float32)    # (1, 4H2)

    wfc_p = jnp.pad(wfc.T.astype(jnp.float32),
                    ((0, 0), (0, Op - O))).astype(jnp.bfloat16)               # (H2, Op)
    bfc_p = jnp.pad(bfc.astype(jnp.float32), ((0, Op - O),)).reshape(1, Op)   # (1, Op)

    args = (x_flat, wih1_p, b1_p, wcomb, b2_p, wfc_p, bfc_p)
    vmem = pl.BlockSpec(memory_space=pltpu.MemorySpace.VMEM)
    out = pl.pallas_call(
        music_lstm_kernel,
        out_shape=jax.ShapeDtypeStruct((Bp, Op), jnp.float32),
        in_specs=[vmem] * len(args),
        out_specs=vmem,
    )(*args)
    return out[:B, :O]


def _reference_forward(x_btd, params):
    """Pure-JAX f32 reference with identical PyTorch LSTM semantics."""
    (wih1, whh1, bih1, bhh1, wih2, whh2, bih2, bhh2, wfc, bfc) = params
    B, T, _ = x_btd.shape
    H1, H2 = whh1.shape[1], whh2.shape[1]

    def cell(x_t, h, c, wih, whh, bih, bhh, H):
        g = x_t @ wih.T + bih + h @ whh.T + bhh
        i = jax.nn.sigmoid(g[:, 0 * H:1 * H])
        f = jax.nn.sigmoid(g[:, 1 * H:2 * H])
        gg = jnp.tanh(g[:, 2 * H:3 * H])
        o = jax.nn.sigmoid(g[:, 3 * H:4 * H])
        c = f * c + i * gg
        h = o * jnp.tanh(c)
        return h, c

    h1 = jnp.zeros((B, H1)); c1 = jnp.zeros((B, H1))
    h2 = jnp.zeros((B, H2)); c2 = jnp.zeros((B, H2))
    for t in range(T):
        h1, c1 = cell(x_btd[:, t, :], h1, c1, wih1, whh1, bih1, bhh1, H1)
        h2, c2 = cell(h1, h2, c2, wih2, whh2, bih2, bhh2, H2)
    return h2 @ wfc.T + bfc


def _init_params(key, input_size, hidden_sizes, output_size):
    """Deterministic PyTorch-style uniform(-1/sqrt(H), 1/sqrt(H)) init."""
    H1, H2 = hidden_sizes
    keys = jax.random.split(key, 10)

    def u(k, shape, H):
        bound = 1.0 / jnp.sqrt(H)
        return jax.random.uniform(k, shape, jnp.float32, -bound, bound)

    wih1 = u(keys[0], (4 * H1, input_size), H1)
    whh1 = u(keys[1], (4 * H1, H1), H1)
    bih1 = u(keys[2], (4 * H1,), H1)
    bhh1 = u(keys[3], (4 * H1,), H1)
    wih2 = u(keys[4], (4 * H2, H1), H2)
    whh2 = u(keys[5], (4 * H2, H2), H2)
    bih2 = u(keys[6], (4 * H2,), H2)
    bhh2 = u(keys[7], (4 * H2,), H2)
    wfc = u(keys[8], (output_size, H2), H2)
    bfc = u(keys[9], (output_size,), H2)
    return (wih1, whh1, bih1, bhh1, wih2, whh2, bih2, bhh2, wfc, bfc)


if __name__ == "__main__":
    B, T = 2, 8
    input_size = 16
    hidden_sizes = [32, 32]
    output_size = 16

    key = jax.random.PRNGKey(0)
    kx, kp = jax.random.split(key)
    x = jax.random.normal(kx, (B, T, input_size), jnp.float32)
    params = _init_params(kp, input_size, hidden_sizes, output_size)

    out = music_lstm_forward(x, params)
    jax.block_until_ready(out)

    ref = _reference_forward(x, params)
    assert out.shape == (B, output_size)
    # Tolerance reflects bf16 matmul operands (f32 accumulation / f32 cell state).
    assert jnp.allclose(out, ref, atol=3e-2, rtol=3e-2), "kernel mismatch vs reference"

    print("KERNEL_OK")
</pallas_src>

<mosaic_0001>
module attributes {stable_mosaic.version = 11 : i64} {
  func.func @music_lstm_kernel(%arg0: memref<64x16xbf16, #tpu.memory_space<vmem>>, %arg1: memref<16x128xbf16, #tpu.memory_space<vmem>>, %arg2: memref<1x128xf32, #tpu.memory_space<vmem>>, %arg3: memref<64x256xbf16, #tpu.memory_space<vmem>>, %arg4: memref<1x128xf32, #tpu.memory_space<vmem>>, %arg5: memref<32x128xbf16, #tpu.memory_space<vmem>>, %arg6: memref<1x128xf32, #tpu.memory_space<vmem>>, %arg7: memref<8x128xf32, #tpu.memory_space<vmem>>) attributes {dimension_semantics = [], scalar_prefetch = 0 : i64, scratch_operands = 0 : i64, tpu.core_type = #tpu.core_type<tc>} {
    %c0 = arith.constant 0 : index
    %c0_0 = arith.constant 0 : index
    %0 = vector.load %arg3[%c0, %c0_0] : memref<64x256xbf16, #tpu.memory_space<vmem>>, vector<64x256xbf16>
    %c0_1 = arith.constant 0 : index
    %c0_2 = arith.constant 0 : index
    %1 = vector.load %arg0[%c0_1, %c0_2] : memref<64x16xbf16, #tpu.memory_space<vmem>>, vector<64x16xbf16>
    %c0_3 = arith.constant 0 : index
    %c0_4 = arith.constant 0 : index
    %2 = vector.load %arg1[%c0_3, %c0_4] : memref<16x128xbf16, #tpu.memory_space<vmem>>, vector<16x128xbf16>
    %cst = arith.constant dense<0.000000e+00> : vector<64x128xf32>
    %3 = tpu.matmul %1, %2, %cst {dimension_numbers = #tpu.dot_dimension_numbers<[1], [0], [0], [1], [0, 0, 1, 1], [], []>} : vector<64x16xbf16>, vector<16x128xbf16>, vector<64x128xf32> -> vector<64x128xf32>
    %c0_5 = arith.constant 0 : index
    %c0_6 = arith.constant 0 : index
    %4 = vector.load %arg2[%c0_5, %c0_6] : memref<1x128xf32, #tpu.memory_space<vmem>>, vector<1x128xf32>
    %5 = vector.broadcast %4 : vector<1x128xf32> to vector<64x128xf32>
    %6 = arith.addf %3, %5 : vector<64x128xf32>
    %c0_7 = arith.constant 0 : index
    %c0_8 = arith.constant 0 : index
    %7 = vector.load %arg4[%c0_7, %c0_8] : memref<1x128xf32, #tpu.memory_space<vmem>>, vector<1x128xf32>
    %8 = vector.shape_cast %7 : vector<1x128xf32> to vector<1x128xf32>
    %9 = vector.broadcast %8 : vector<1x128xf32> to vector<8x128xf32>
    %10 = vector.extract_strided_slice %6 {offsets = [0, 0], sizes = [8, 128], strides = [1, 1]} : vector<64x128xf32> to vector<8x128xf32>
    %cst_9 = arith.constant 0.000000e+00 : f32
    %11 = vector.broadcast %cst_9 : f32 to vector<8x32xf32>
    %12 = vector.extract_strided_slice %10 {offsets = [0, 0], sizes = [8, 96], strides = [1, 1]} : vector<8x128xf32> to vector<8x96xf32>
    %13 = arith.negf %12 : vector<8x96xf32>
    %14 = math.exp %13 : vector<8x96xf32>
    %cst_10 = arith.constant 1.000000e+00 : f32
    %15 = vector.broadcast %cst_10 : f32 to vector<8x96xf32>
    %16 = arith.addf %15, %14 : vector<8x96xf32>
    %17 = arith.divf %15, %16 : vector<8x96xf32>
    %18 = vector.extract_strided_slice %10 {offsets = [0, 96], sizes = [8, 32], strides = [1, 1]} : vector<8x128xf32> to vector<8x32xf32>
    %19 = math.tanh %18 : vector<8x32xf32>
    %20 = vector.extract_strided_slice %17 {offsets = [0, 0], sizes = [8, 32], strides = [1, 1]} : vector<8x96xf32> to vector<8x32xf32>
    %21 = vector.extract_strided_slice %17 {offsets = [0, 32], sizes = [8, 32], strides = [1, 1]} : vector<8x96xf32> to vector<8x32xf32>
    %22 = vector.extract_strided_slice %17 {offsets = [0, 64], sizes = [8, 32], strides = [1, 1]} : vector<8x96xf32> to vector<8x32xf32>
    %23 = arith.mulf %21, %11 : vector<8x32xf32>
    %24 = arith.mulf %20, %19 : vector<8x32xf32>
    %25 = arith.addf %23, %24 : vector<8x32xf32>
    %26 = math.tanh %25 : vector<8x32xf32>
    %27 = arith.mulf %22, %26 : vector<8x32xf32>
    %cst_11 = arith.constant 0.000000e+00 : f32
    %28 = vector.broadcast %cst_11 : f32 to vector<8x32xf32>
    %cst_12 = arith.constant 0.000000e+00 : f32
    %29 = vector.broadcast %cst_12 : f32 to vector<8x32xf32>
    %30 = tpu.concatenate %27, %28 in 1 : vector<8x32xf32>, vector<8x32xf32> -> vector<8x64xf32>
    %31 = arith.truncf %30 : vector<8x64xf32> to vector<8x64xbf16>
    %cst_13 = arith.constant dense<0.000000e+00> : vector<8x256xf32>
    %32 = tpu.matmul %31, %0, %cst_13 {dimension_numbers = #tpu.dot_dimension_numbers<[1], [0], [0], [1], [0, 0, 1, 1], [], []>} : vector<8x64xbf16>, vector<64x256xbf16>, vector<8x256xf32> -> vector<8x256xf32>
    %33 = vector.extract_strided_slice %32 {offsets = [0, 128], sizes = [8, 128], strides = [1, 1]} : vector<8x256xf32> to vector<8x128xf32>
    %34 = arith.addf %33, %9 : vector<8x128xf32>
    %35 = vector.extract_strided_slice %34 {offsets = [0, 0], sizes = [8, 96], strides = [1, 1]} : vector<8x128xf32> to vector<8x96xf32>
    %36 = arith.negf %35 : vector<8x96xf32>
    %37 = math.exp %36 : vector<8x96xf32>
    %cst_14 = arith.constant 1.000000e+00 : f32
    %38 = vector.broadcast %cst_14 : f32 to vector<8x96xf32>
    %39 = arith.addf %38, %37 : vector<8x96xf32>
    %40 = arith.divf %38, %39 : vector<8x96xf32>
    %41 = vector.extract_strided_slice %34 {offsets = [0, 96], sizes = [8, 32], strides = [1, 1]} : vector<8x128xf32> to vector<8x32xf32>
    %42 = math.tanh %41 : vector<8x32xf32>
    %43 = vector.extract_strided_slice %40 {offsets = [0, 0], sizes = [8, 32], strides = [1, 1]} : vector<8x96xf32> to vector<8x32xf32>
    %44 = vector.extract_strided_slice %40 {offsets = [0, 32], sizes = [8, 32], strides = [1, 1]} : vector<8x96xf32> to vector<8x32xf32>
    %45 = vector.extract_strided_slice %40 {offsets = [0, 64], sizes = [8, 32], strides = [1, 1]} : vector<8x96xf32> to vector<8x32xf32>
    %46 = arith.mulf %44, %29 : vector<8x32xf32>
    %47 = arith.mulf %43, %42 : vector<8x32xf32>
    %48 = arith.addf %46, %47 : vector<8x32xf32>
    %49 = math.tanh %48 : vector<8x32xf32>
    %50 = arith.mulf %45, %49 : vector<8x32xf32>
    %51 = vector.extract_strided_slice %6 {offsets = [8, 0], sizes = [8, 128], strides = [1, 1]} : vector<64x128xf32> to vector<8x128xf32>
    %52 = vector.extract_strided_slice %32 {offsets = [0, 0], sizes = [8, 128], strides = [1, 1]} : vector<8x256xf32> to vector<8x128xf32>
    %53 = arith.addf %51, %52 : vector<8x128xf32>
    %54 = vector.extract_strided_slice %53 {offsets = [0, 0], sizes = [8, 96], strides = [1, 1]} : vector<8x128xf32> to vector<8x96xf32>
    %55 = arith.negf %54 : vector<8x96xf32>
    %56 = math.exp %55 : vector<8x96xf32>
    %cst_15 = arith.constant 1.000000e+00 : f32
    %57 = vector.broadcast %cst_15 : f32 to vector<8x96xf32>
    %58 = arith.addf %57, %56 : vector<8x96xf32>
    %59 = arith.divf %57, %58 : vector<8x96xf32>
    %60 = vector.extract_strided_slice %53 {offsets = [0, 96], sizes = [8, 32], strides = [1, 1]} : vector<8x128xf32> to vector<8x32xf32>
    %61 = math.tanh %60 : vector<8x32xf32>
    %62 = vector.extract_strided_slice %59 {offsets = [0, 0], sizes = [8, 32], strides = [1, 1]} : vector<8x96xf32> to vector<8x32xf32>
    %63 = vector.extract_strided_slice %59 {offsets = [0, 32], sizes = [8, 32], strides = [1, 1]} : vector<8x96xf32> to vector<8x32xf32>
    %64 = vector.extract_strided_slice %59 {offsets = [0, 64], sizes = [8, 32], strides = [1, 1]} : vector<8x96xf32> to vector<8x32xf32>
    %65 = arith.mulf %63, %25 : vector<8x32xf32>
    %66 = arith.mulf %62, %61 : vector<8x32xf32>
    %67 = arith.addf %65, %66 : vector<8x32xf32>
    %68 = math.tanh %67 : vector<8x32xf32>
    %69 = arith.mulf %64, %68 : vector<8x32xf32>
    %70 = tpu.concatenate %69, %50 in 1 : vector<8x32xf32>, vector<8x32xf32> -> vector<8x64xf32>
    %71 = arith.truncf %70 : vector<8x64xf32> to vector<8x64xbf16>
    %cst_16 = arith.constant dense<0.000000e+00> : vector<8x256xf32>
    %72 = tpu.matmul %71, %0, %cst_16 {dimension_numbers = #tpu.dot_dimension_numbers<[1], [0], [0], [1], [0, 0, 1, 1], [], []>} : vector<8x64xbf16>, vector<64x256xbf16>, vector<8x256xf32> -> vector<8x256xf32>
    %73 = vector.extract_strided_slice %72 {offsets = [0, 128], sizes = [8, 128], strides = [1, 1]} : vector<8x256xf32> to vector<8x128xf32>
    %74 = arith.addf %73, %9 : vector<8x128xf32>
    %75 = vector.extract_strided_slice %74 {offsets = [0, 0], sizes = [8, 96], strides = [1, 1]} : vector<8x128xf32> to vector<8x96xf32>
    %76 = arith.negf %75 : vector<8x96xf32>
    %77 = math.exp %76 : vector<8x96xf32>
    %cst_17 = arith.constant 1.000000e+00 : f32
    %78 = vector.broadcast %cst_17 : f32 to vector<8x96xf32>
    %79 = arith.addf %78, %77 : vector<8x96xf32>
    %80 = arith.divf %78, %79 : vector<8x96xf32>
    %81 = vector.extract_strided_slice %74 {offsets = [0, 96], sizes = [8, 32], strides = [1, 1]} : vector<8x128xf32> to vector<8x32xf32>
    %82 = math.tanh %81 : vector<8x32xf32>
    %83 = vector.extract_strided_slice %80 {offsets = [0, 0], sizes = [8, 32], strides = [1, 1]} : vector<8x96xf32> to vector<8x32xf32>
    %84 = vector.extract_strided_slice %80 {offsets = [0, 32], sizes = [8, 32], strides = [1, 1]} : vector<8x96xf32> to vector<8x32xf32>
    %85 = vector.extract_strided_slice %80 {offsets = [0, 64], sizes = [8, 32], strides = [1, 1]} : vector<8x96xf32> to vector<8x32xf32>
    %86 = arith.mulf %84, %48 : vector<8x32xf32>
    %87 = arith.mulf %83, %82 : vector<8x32xf32>
    %88 = arith.addf %86, %87 : vector<8x32xf32>
    %89 = math.tanh %88 : vector<8x32xf32>
    %90 = arith.mulf %85, %89 : vector<8x32xf32>
    %91 = vector.extract_strided_slice %6 {offsets = [16, 0], sizes = [8, 128], strides = [1, 1]} : vector<64x128xf32> to vector<8x128xf32>
    %92 = vector.extract_strided_slice %72 {offsets = [0, 0], sizes = [8, 128], strides = [1, 1]} : vector<8x256xf32> to vector<8x128xf32>
    %93 = arith.addf %91, %92 : vector<8x128xf32>
    %94 = vector.extract_strided_slice %93 {offsets = [0, 0], sizes = [8, 96], strides = [1, 1]} : vector<8x128xf32> to vector<8x96xf32>
    %95 = arith.negf %94 : vector<8x96xf32>
    %96 = math.exp %95 : vector<8x96xf32>
    %cst_18 = arith.constant 1.000000e+00 : f32
    %97 = vector.broadcast %cst_18 : f32 to vector<8x96xf32>
    %98 = arith.addf %97, %96 : vector<8x96xf32>
    %99 = arith.divf %97, %98 : vector<8x96xf32>
    %100 = vector.extract_strided_slice %93 {offsets = [0, 96], sizes = [8, 32], strides = [1, 1]} : vector<8x128xf32> to vector<8x32xf32>
    %101 = math.tanh %100 : vector<8x32xf32>
    %102 = vector.extract_strided_slice %99 {offsets = [0, 0], sizes = [8, 32], strides = [1, 1]} : vector<8x96xf32> to vector<8x32xf32>
    %103 = vector.extract_strided_slice %99 {offsets = [0, 32], sizes = [8, 32], strides = [1, 1]} : vector<8x96xf32> to vector<8x32xf32>
    %104 = vector.extract_strided_slice %99 {offsets = [0, 64], sizes = [8, 32], strides = [1, 1]} : vector<8x96xf32> to vector<8x32xf32>
    %105 = arith.mulf %103, %67 : vector<8x32xf32>
    %106 = arith.mulf %102, %101 : vector<8x32xf32>
    %107 = arith.addf %105, %106 : vector<8x32xf32>
    %108 = math.tanh %107 : vector<8x32xf32>
    %109 = arith.mulf %104, %108 : vector<8x32xf32>
    %110 = tpu.concatenate %109, %90 in 1 : vector<8x32xf32>, vector<8x32xf32> -> vector<8x64xf32>
    %111 = arith.truncf %110 : vector<8x64xf32> to vector<8x64xbf16>
    %cst_19 = arith.constant dense<0.000000e+00> : vector<8x256xf32>
    %112 = tpu.matmul %111, %0, %cst_19 {dimension_numbers = #tpu.dot_dimension_numbers<[1], [0], [0], [1], [0, 0, 1, 1], [], []>} : vector<8x64xbf16>, vector<64x256xbf16>, vector<8x256xf32> -> vector<8x256xf32>
    %113 = vector.extract_strided_slice %112 {offsets = [0, 128], sizes = [8, 128], strides = [1, 1]} : vector<8x256xf32> to vector<8x128xf32>
    %114 = arith.addf %113, %9 : vector<8x128xf32>
    %115 = vector.extract_strided_slice %114 {offsets = [0, 0], sizes = [8, 96], strides = [1, 1]} : vector<8x128xf32> to vector<8x96xf32>
    %116 = arith.negf %115 : vector<8x96xf32>
    %117 = math.exp %116 : vector<8x96xf32>
    %cst_20 = arith.constant 1.000000e+00 : f32
    %118 = vector.broadcast %cst_20 : f32 to vector<8x96xf32>
    %119 = arith.addf %118, %117 : vector<8x96xf32>
    %120 = arith.divf %118, %119 : vector<8x96xf32>
    %121 = vector.extract_strided_slice %114 {offsets = [0, 96], sizes = [8, 32], strides = [1, 1]} : vector<8x128xf32> to vector<8x32xf32>
    %122 = math.tanh %121 : vector<8x32xf32>
    %123 = vector.extract_strided_slice %120 {offsets = [0, 0], sizes = [8, 32], strides = [1, 1]} : vector<8x96xf32> to vector<8x32xf32>
    %124 = vector.extract_strided_slice %120 {offsets = [0, 32], sizes = [8, 32], strides = [1, 1]} : vector<8x96xf32> to vector<8x32xf32>
    %125 = vector.extract_strided_slice %120 {offsets = [0, 64], sizes = [8, 32], strides = [1, 1]} : vector<8x96xf32> to vector<8x32xf32>
    %126 = arith.mulf %124, %88 : vector<8x32xf32>
    %127 = arith.mulf %123, %122 : vector<8x32xf32>
    %128 = arith.addf %126, %127 : vector<8x32xf32>
    %129 = math.tanh %128 : vector<8x32xf32>
    %130 = arith.mulf %125, %129 : vector<8x32xf32>
    %131 = vector.extract_strided_slice %6 {offsets = [24, 0], sizes = [8, 128], strides = [1, 1]} : vector<64x128xf32> to vector<8x128xf32>
    %132 = vector.extract_strided_slice %112 {offsets = [0, 0], sizes = [8, 128], strides = [1, 1]} : vector<8x256xf32> to vector<8x128xf32>
    %133 = arith.addf %131, %132 : vector<8x128xf32>
    %134 = vector.extract_strided_slice %133 {offsets = [0, 0], sizes = [8, 96], strides = [1, 1]} : vector<8x128xf32> to vector<8x96xf32>
    %135 = arith.negf %134 : vector<8x96xf32>
    %136 = math.exp %135 : vector<8x96xf32>
    %cst_21 = arith.constant 1.000000e+00 : f32
    %137 = vector.broadcast %cst_21 : f32 to vector<8x96xf32>
    %138 = arith.addf %137, %136 : vector<8x96xf32>
    %139 = arith.divf %137, %138 : vector<8x96xf32>
    %140 = vector.extract_strided_slice %133 {offsets = [0, 96], sizes = [8, 32], strides = [1, 1]} : vector<8x128xf32> to vector<8x32xf32>
    %141 = math.tanh %140 : vector<8x32xf32>
    %142 = vector.extract_strided_slice %139 {offsets = [0, 0], sizes = [8, 32], strides = [1, 1]} : vector<8x96xf32> to vector<8x32xf32>
    %143 = vector.extract_strided_slice %139 {offsets = [0, 32], sizes = [8, 32], strides = [1, 1]} : vector<8x96xf32> to vector<8x32xf32>
    %144 = vector.extract_strided_slice %139 {offsets = [0, 64], sizes = [8, 32], strides = [1, 1]} : vector<8x96xf32> to vector<8x32xf32>
    %145 = arith.mulf %143, %107 : vector<8x32xf32>
    %146 = arith.mulf %142, %141 : vector<8x32xf32>
    %147 = arith.addf %145, %146 : vector<8x32xf32>
    %148 = math.tanh %147 : vector<8x32xf32>
    %149 = arith.mulf %144, %148 : vector<8x32xf32>
    %150 = tpu.concatenate %149, %130 in 1 : vector<8x32xf32>, vector<8x32xf32> -> vector<8x64xf32>
    %151 = arith.truncf %150 : vector<8x64xf32> to vector<8x64xbf16>
    %cst_22 = arith.constant dense<0.000000e+00> : vector<8x256xf32>
    %152 = tpu.matmul %151, %0, %cst_22 {dimension_numbers = #tpu.dot_dimension_numbers<[1], [0], [0], [1], [0, 0, 1, 1], [], []>} : vector<8x64xbf16>, vector<64x256xbf16>, vector<8x256xf32> -> vector<8x256xf32>
    %153 = vector.extract_strided_slice %152 {offsets = [0, 128], sizes = [8, 128], strides = [1, 1]} : vector<8x256xf32> to vector<8x128xf32>
    %154 = arith.addf %153, %9 : vector<8x128xf32>
    %155 = vector.extract_strided_slice %154 {offsets = [0, 0], sizes = [8, 96], strides = [1, 1]} : vector<8x128xf32> to vector<8x96xf32>
    %156 = arith.negf %155 : vector<8x96xf32>
    %157 = math.exp %156 : vector<8x96xf32>
    %cst_23 = arith.constant 1.000000e+00 : f32
    %158 = vector.broadcast %cst_23 : f32 to vector<8x96xf32>
    %159 = arith.addf %158, %157 : vector<8x96xf32>
    %160 = arith.divf %158, %159 : vector<8x96xf32>
    %161 = vector.extract_strided_slice %154 {offsets = [0, 96], sizes = [8, 32], strides = [1, 1]} : vector<8x128xf32> to vector<8x32xf32>
    %162 = math.tanh %161 : vector<8x32xf32>
    %163 = vector.extract_strided_slice %160 {offsets = [0, 0], sizes = [8, 32], strides = [1, 1]} : vector<8x96xf32> to vector<8x32xf32>
    %164 = vector.extract_strided_slice %160 {offsets = [0, 32], sizes = [8, 32], strides = [1, 1]} : vector<8x96xf32> to vector<8x32xf32>
    %165 = vector.extract_strided_slice %160 {offsets = [0, 64], sizes = [8, 32], strides = [1, 1]} : vector<8x96xf32> to vector<8x32xf32>
    %166 = arith.mulf %164, %128 : vector<8x32xf32>
    %167 = arith.mulf %163, %162 : vector<8x32xf32>
    %168 = arith.addf %166, %167 : vector<8x32xf32>
    %169 = math.tanh %168 : vector<8x32xf32>
    %170 = arith.mulf %165, %169 : vector<8x32xf32>
    %171 = vector.extract_strided_slice %6 {offsets = [32, 0], sizes = [8, 128], strides = [1, 1]} : vector<64x128xf32> to vector<8x128xf32>
    %172 = vector.extract_strided_slice %152 {offsets = [0, 0], sizes = [8, 128], strides = [1, 1]} : vector<8x256xf32> to vector<8x128xf32>
    %173 = arith.addf %171, %172 : vector<8x128xf32>
    %174 = vector.extract_strided_slice %173 {offsets = [0, 0], sizes = [8, 96], strides = [1, 1]} : vector<8x128xf32> to vector<8x96xf32>
    %175 = arith.negf %174 : vector<8x96xf32>
    %176 = math.exp %175 : vector<8x96xf32>
    %cst_24 = arith.constant 1.000000e+00 : f32
    %177 = vector.broadcast %cst_24 : f32 to vector<8x96xf32>
    %178 = arith.addf %177, %176 : vector<8x96xf32>
    %179 = arith.divf %177, %178 : vector<8x96xf32>
    %180 = vector.extract_strided_slice %173 {offsets = [0, 96], sizes = [8, 32], strides = [1, 1]} : vector<8x128xf32> to vector<8x32xf32>
    %181 = math.tanh %180 : vector<8x32xf32>
    %182 = vector.extract_strided_slice %179 {offsets = [0, 0], sizes = [8, 32], strides = [1, 1]} : vector<8x96xf32> to vector<8x32xf32>
    %183 = vector.extract_strided_slice %179 {offsets = [0, 32], sizes = [8, 32], strides = [1, 1]} : vector<8x96xf32> to vector<8x32xf32>
    %184 = vector.extract_strided_slice %179 {offsets = [0, 64], sizes = [8, 32], strides = [1, 1]} : vector<8x96xf32> to vector<8x32xf32>
    %185 = arith.mulf %183, %147 : vector<8x32xf32>
    %186 = arith.mulf %182, %181 : vector<8x32xf32>
    %187 = arith.addf %185, %186 : vector<8x32xf32>
    %188 = math.tanh %187 : vector<8x32xf32>
    %189 = arith.mulf %184, %188 : vector<8x32xf32>
    %190 = tpu.concatenate %189, %170 in 1 : vector<8x32xf32>, vector<8x32xf32> -> vector<8x64xf32>
    %191 = arith.truncf %190 : vector<8x64xf32> to vector<8x64xbf16>
    %cst_25 = arith.constant dense<0.000000e+00> : vector<8x256xf32>
    %192 = tpu.matmul %191, %0, %cst_25 {dimension_numbers = #tpu.dot_dimension_numbers<[1], [0], [0], [1], [0, 0, 1, 1], [], []>} : vector<8x64xbf16>, vector<64x256xbf16>, vector<8x256xf32> -> vector<8x256xf32>
    %193 = vector.extract_strided_slice %192 {offsets = [0, 128], sizes = [8, 128], strides = [1, 1]} : vector<8x256xf32> to vector<8x128xf32>
    %194 = arith.addf %193, %9 : vector<8x128xf32>
    %195 = vector.extract_strided_slice %194 {offsets = [0, 0], sizes = [8, 96], strides = [1, 1]} : vector<8x128xf32> to vector<8x96xf32>
    %196 = arith.negf %195 : vector<8x96xf32>
    %197 = math.exp %196 : vector<8x96xf32>
    %cst_26 = arith.constant 1.000000e+00 : f32
    %198 = vector.broadcast %cst_26 : f32 to vector<8x96xf32>
    %199 = arith.addf %198, %197 : vector<8x96xf32>
    %200 = arith.divf %198, %199 : vector<8x96xf32>
    %201 = vector.extract_strided_slice %194 {offsets = [0, 96], sizes = [8, 32], strides = [1, 1]} : vector<8x128xf32> to vector<8x32xf32>
    %202 = math.tanh %201 : vector<8x32xf32>
    %203 = vector.extract_strided_slice %200 {offsets = [0, 0], sizes = [8, 32], strides = [1, 1]} : vector<8x96xf32> to vector<8x32xf32>
    %204 = vector.extract_strided_slice %200 {offsets = [0, 32], sizes = [8, 32], strides = [1, 1]} : vector<8x96xf32> to vector<8x32xf32>
    %205 = vector.extract_strided_slice %200 {offsets = [0, 64], sizes = [8, 32], strides = [1, 1]} : vector<8x96xf32> to vector<8x32xf32>
    %206 = arith.mulf %204, %168 : vector<8x32xf32>
    %207 = arith.mulf %203, %202 : vector<8x32xf32>
    %208 = arith.addf %206, %207 : vector<8x32xf32>
    %209 = math.tanh %208 : vector<8x32xf32>
    %210 = arith.mulf %205, %209 : vector<8x32xf32>
    %211 = vector.extract_strided_slice %6 {offsets = [40, 0], sizes = [8, 128], strides = [1, 1]} : vector<64x128xf32> to vector<8x128xf32>
    %212 = vector.extract_strided_slice %192 {offsets = [0, 0], sizes = [8, 128], strides = [1, 1]} : vector<8x256xf32> to vector<8x128xf32>
    %213 = arith.addf %211, %212 : vector<8x128xf32>
    %214 = vector.extract_strided_slice %213 {offsets = [0, 0], sizes = [8, 96], strides = [1, 1]} : vector<8x128xf32> to vector<8x96xf32>
    %215 = arith.negf %214 : vector<8x96xf32>
    %216 = math.exp %215 : vector<8x96xf32>
    %cst_27 = arith.constant 1.000000e+00 : f32
    %217 = vector.broadcast %cst_27 : f32 to vector<8x96xf32>
    %218 = arith.addf %217, %216 : vector<8x96xf32>
    %219 = arith.divf %217, %218 : vector<8x96xf32>
    %220 = vector.extract_strided_slice %213 {offsets = [0, 96], sizes = [8, 32], strides = [1, 1]} : vector<8x128xf32> to vector<8x32xf32>
    %221 = math.tanh %220 : vector<8x32xf32>
    %222 = vector.extract_strided_slice %219 {offsets = [0, 0], sizes = [8, 32], strides = [1, 1]} : vector<8x96xf32> to vector<8x32xf32>
    %223 = vector.extract_strided_slice %219 {offsets = [0, 32], sizes = [8, 32], strides = [1, 1]} : vector<8x96xf32> to vector<8x32xf32>
    %224 = vector.extract_strided_slice %219 {offsets = [0, 64], sizes = [8, 32], strides = [1, 1]} : vector<8x96xf32> to vector<8x32xf32>
    %225 = arith.mulf %223, %187 : vector<8x32xf32>
    %226 = arith.mulf %222, %221 : vector<8x32xf32>
    %227 = arith.addf %225, %226 : vector<8x32xf32>
    %228 = math.tanh %227 : vector<8x32xf32>
    %229 = arith.mulf %224, %228 : vector<8x32xf32>
    %230 = tpu.concatenate %229, %210 in 1 : vector<8x32xf32>, vector<8x32xf32> -> vector<8x64xf32>
    %231 = arith.truncf %230 : vector<8x64xf32> to vector<8x64xbf16>
    %cst_28 = arith.constant dense<0.000000e+00> : vector<8x256xf32>
    %232 = tpu.matmul %231, %0, %cst_28 {dimension_numbers = #tpu.dot_dimension_numbers<[1], [0], [0], [1], [0, 0, 1, 1], [], []>} : vector<8x64xbf16>, vector<64x256xbf16>, vector<8x256xf32> -> vector<8x256xf32>
    %233 = vector.extract_strided_slice %232 {offsets = [0, 128], sizes = [8, 128], strides = [1, 1]} : vector<8x256xf32> to vector<8x128xf32>
    %234 = arith.addf %233, %9 : vector<8x128xf32>
    %235 = vector.extract_strided_slice %234 {offsets = [0, 0], sizes = [8, 96], strides = [1, 1]} : vector<8x128xf32> to vector<8x96xf32>
    %236 = arith.negf %235 : vector<8x96xf32>
    %237 = math.exp %236 : vector<8x96xf32>
    %cst_29 = arith.constant 1.000000e+00 : f32
    %238 = vector.broadcast %cst_29 : f32 to vector<8x96xf32>
    %239 = arith.addf %238, %237 : vector<8x96xf32>
    %240 = arith.divf %238, %239 : vector<8x96xf32>
    %241 = vector.extract_strided_slice %234 {offsets = [0, 96], sizes = [8, 32], strides = [1, 1]} : vector<8x128xf32> to vector<8x32xf32>
    %242 = math.tanh %241 : vector<8x32xf32>
    %243 = vector.extract_strided_slice %240 {offsets = [0, 0], sizes = [8, 32], strides = [1, 1]} : vector<8x96xf32> to vector<8x32xf32>
    %244 = vector.extract_strided_slice %240 {offsets = [0, 32], sizes = [8, 32], strides = [1, 1]} : vector<8x96xf32> to vector<8x32xf32>
    %245 = vector.extract_strided_slice %240 {offsets = [0, 64], sizes = [8, 32], strides = [1, 1]} : vector<8x96xf32> to vector<8x32xf32>
    %246 = arith.mulf %244, %208 : vector<8x32xf32>
    %247 = arith.mulf %243, %242 : vector<8x32xf32>
    %248 = arith.addf %246, %247 : vector<8x32xf32>
    %249 = math.tanh %248 : vector<8x32xf32>
    %250 = arith.mulf %245, %249 : vector<8x32xf32>
    %251 = vector.extract_strided_slice %6 {offsets = [48, 0], sizes = [8, 128], strides = [1, 1]} : vector<64x128xf32> to vector<8x128xf32>
    %252 = vector.extract_strided_slice %232 {offsets = [0, 0], sizes = [8, 128], strides = [1, 1]} : vector<8x256xf32> to vector<8x128xf32>
    %253 = arith.addf %251, %252 : vector<8x128xf32>
    %254 = vector.extract_strided_slice %253 {offsets = [0, 0], sizes = [8, 96], strides = [1, 1]} : vector<8x128xf32> to vector<8x96xf32>
    %255 = arith.negf %254 : vector<8x96xf32>
    %256 = math.exp %255 : vector<8x96xf32>
    %cst_30 = arith.constant 1.000000e+00 : f32
    %257 = vector.broadcast %cst_30 : f32 to vector<8x96xf32>
    %258 = arith.addf %257, %256 : vector<8x96xf32>
    %259 = arith.divf %257, %258 : vector<8x96xf32>
    %260 = vector.extract_strided_slice %253 {offsets = [0, 96], sizes = [8, 32], strides = [1, 1]} : vector<8x128xf32> to vector<8x32xf32>
    %261 = math.tanh %260 : vector<8x32xf32>
    %262 = vector.extract_strided_slice %259 {offsets = [0, 0], sizes = [8, 32], strides = [1, 1]} : vector<8x96xf32> to vector<8x32xf32>
    %263 = vector.extract_strided_slice %259 {offsets = [0, 32], sizes = [8, 32], strides = [1, 1]} : vector<8x96xf32> to vector<8x32xf32>
    %264 = vector.extract_strided_slice %259 {offsets = [0, 64], sizes = [8, 32], strides = [1, 1]} : vector<8x96xf32> to vector<8x32xf32>
    %265 = arith.mulf %263, %227 : vector<8x32xf32>
    %266 = arith.mulf %262, %261 : vector<8x32xf32>
    %267 = arith.addf %265, %266 : vector<8x32xf32>
    %268 = math.tanh %267 : vector<8x32xf32>
    %269 = arith.mulf %264, %268 : vector<8x32xf32>
    %270 = tpu.concatenate %269, %250 in 1 : vector<8x32xf32>, vector<8x32xf32> -> vector<8x64xf32>
    %271 = arith.truncf %270 : vector<8x64xf32> to vector<8x64xbf16>
    %cst_31 = arith.constant dense<0.000000e+00> : vector<8x256xf32>
    %272 = tpu.matmul %271, %0, %cst_31 {dimension_numbers = #tpu.dot_dimension_numbers<[1], [0], [0], [1], [0, 0, 1, 1], [], []>} : vector<8x64xbf16>, vector<64x256xbf16>, vector<8x256xf32> -> vector<8x256xf32>
    %273 = vector.extract_strided_slice %272 {offsets = [0, 128], sizes = [8, 128], strides = [1, 1]} : vector<8x256xf32> to vector<8x128xf32>
    %274 = arith.addf %273, %9 : vector<8x128xf32>
    %275 = vector.extract_strided_slice %274 {offsets = [0, 0], sizes = [8, 96], strides = [1, 1]} : vector<8x128xf32> to vector<8x96xf32>
    %276 = arith.negf %275 : vector<8x96xf32>
    %277 = math.exp %276 : vector<8x96xf32>
    %cst_32 = arith.constant 1.000000e+00 : f32
    %278 = vector.broadcast %cst_32 : f32 to vector<8x96xf32>
    %279 = arith.addf %278, %277 : vector<8x96xf32>
    %280 = arith.divf %278, %279 : vector<8x96xf32>
    %281 = vector.extract_strided_slice %274 {offsets = [0, 96], sizes = [8, 32], strides = [1, 1]} : vector<8x128xf32> to vector<8x32xf32>
    %282 = math.tanh %281 : vector<8x32xf32>
    %283 = vector.extract_strided_slice %280 {offsets = [0, 0], sizes = [8, 32], strides = [1, 1]} : vector<8x96xf32> to vector<8x32xf32>
    %284 = vector.extract_strided_slice %280 {offsets = [0, 32], sizes = [8, 32], strides = [1, 1]} : vector<8x96xf32> to vector<8x32xf32>
    %285 = vector.extract_strided_slice %280 {offsets = [0, 64], sizes = [8, 32], strides = [1, 1]} : vector<8x96xf32> to vector<8x32xf32>
    %286 = arith.mulf %284, %248 : vector<8x32xf32>
    %287 = arith.mulf %283, %282 : vector<8x32xf32>
    %288 = arith.addf %286, %287 : vector<8x32xf32>
    %289 = math.tanh %288 : vector<8x32xf32>
    %290 = arith.mulf %285, %289 : vector<8x32xf32>
    %291 = vector.extract_strided_slice %6 {offsets = [56, 0], sizes = [8, 128], strides = [1, 1]} : vector<64x128xf32> to vector<8x128xf32>
    %292 = vector.extract_strided_slice %272 {offsets = [0, 0], sizes = [8, 128], strides = [1, 1]} : vector<8x256xf32> to vector<8x128xf32>
    %293 = arith.addf %291, %292 : vector<8x128xf32>
    %294 = vector.extract_strided_slice %293 {offsets = [0, 0], sizes = [8, 96], strides = [1, 1]} : vector<8x128xf32> to vector<8x96xf32>
    %295 = arith.negf %294 : vector<8x96xf32>
    %296 = math.exp %295 : vector<8x96xf32>
    %cst_33 = arith.constant 1.000000e+00 : f32
    %297 = vector.broadcast %cst_33 : f32 to vector<8x96xf32>
    %298 = arith.addf %297, %296 : vector<8x96xf32>
    %299 = arith.divf %297, %298 : vector<8x96xf32>
    %300 = vector.extract_strided_slice %293 {offsets = [0, 96], sizes = [8, 32], strides = [1, 1]} : vector<8x128xf32> to vector<8x32xf32>
    %301 = math.tanh %300 : vector<8x32xf32>
    %302 = vector.extract_strided_slice %299 {offsets = [0, 0], sizes = [8, 32], strides = [1, 1]} : vector<8x96xf32> to vector<8x32xf32>
    %303 = vector.extract_strided_slice %299 {offsets = [0, 32], sizes = [8, 32], strides = [1, 1]} : vector<8x96xf32> to vector<8x32xf32>
    %304 = vector.extract_strided_slice %299 {offsets = [0, 64], sizes = [8, 32], strides = [1, 1]} : vector<8x96xf32> to vector<8x32xf32>
    %305 = arith.mulf %303, %267 : vector<8x32xf32>
    %306 = arith.mulf %302, %301 : vector<8x32xf32>
    %307 = arith.addf %305, %306 : vector<8x32xf32>
    %308 = math.tanh %307 : vector<8x32xf32>
    %309 = arith.mulf %304, %308 : vector<8x32xf32>
    %310 = tpu.concatenate %309, %290 in 1 : vector<8x32xf32>, vector<8x32xf32> -> vector<8x64xf32>
    %311 = arith.truncf %310 : vector<8x64xf32> to vector<8x64xbf16>
    %cst_34 = arith.constant dense<0.000000e+00> : vector<8x256xf32>
    %312 = tpu.matmul %311, %0, %cst_34 {dimension_numbers = #tpu.dot_dimension_numbers<[1], [0], [0], [1], [0, 0, 1, 1], [], []>} : vector<8x64xbf16>, vector<64x256xbf16>, vector<8x256xf32> -> vector<8x256xf32>
    %313 = vector.extract_strided_slice %312 {offsets = [0, 128], sizes = [8, 128], strides = [1, 1]} : vector<8x256xf32> to vector<8x128xf32>
    %314 = arith.addf %313, %9 : vector<8x128xf32>
    %315 = vector.extract_strided_slice %314 {offsets = [0, 0], sizes = [8, 96], strides = [1, 1]} : vector<8x128xf32> to vector<8x96xf32>
    %316 = arith.negf %315 : vector<8x96xf32>
    %317 = math.exp %316 : vector<8x96xf32>
    %cst_35 = arith.constant 1.000000e+00 : f32
    %318 = vector.broadcast %cst_35 : f32 to vector<8x96xf32>
    %319 = arith.addf %318, %317 : vector<8x96xf32>
    %320 = arith.divf %318, %319 : vector<8x96xf32>
    %321 = vector.extract_strided_slice %314 {offsets = [0, 96], sizes = [8, 32], strides = [1, 1]} : vector<8x128xf32> to vector<8x32xf32>
    %322 = math.tanh %321 : vector<8x32xf32>
    %323 = vector.extract_strided_slice %320 {offsets = [0, 0], sizes = [8, 32], strides = [1, 1]} : vector<8x96xf32> to vector<8x32xf32>
    %324 = vector.extract_strided_slice %320 {offsets = [0, 32], sizes = [8, 32], strides = [1, 1]} : vector<8x96xf32> to vector<8x32xf32>
    %325 = vector.extract_strided_slice %320 {offsets = [0, 64], sizes = [8, 32], strides = [1, 1]} : vector<8x96xf32> to vector<8x32xf32>
    %326 = arith.mulf %324, %288 : vector<8x32xf32>
    %327 = arith.mulf %323, %322 : vector<8x32xf32>
    %328 = arith.addf %326, %327 : vector<8x32xf32>
    %329 = math.tanh %328 : vector<8x32xf32>
    %330 = arith.mulf %325, %329 : vector<8x32xf32>
    %331 = arith.truncf %330 : vector<8x32xf32> to vector<8x32xbf16>
    %c0_36 = arith.constant 0 : index
    %c0_37 = arith.constant 0 : index
    %332 = vector.load %arg5[%c0_36, %c0_37] : memref<32x128xbf16, #tpu.memory_space<vmem>>, vector<32x128xbf16>
    %cst_38 = arith.constant dense<0.000000e+00> : vector<8x128xf32>
    %333 = tpu.matmul %331, %332, %cst_38 {dimension_numbers = #tpu.dot_dimension_numbers<[1], [0], [0], [1], [0, 0, 1, 1], [], []>} : vector<8x32xbf16>, vector<32x128xbf16>, vector<8x128xf32> -> vector<8x128xf32>
    %c0_39 = arith.constant 0 : index
    %c0_40 = arith.constant 0 : index
    %334 = vector.load %arg6[%c0_39, %c0_40] : memref<1x128xf32, #tpu.memory_space<vmem>>, vector<1x128xf32>
    %335 = vector.broadcast %334 : vector<1x128xf32> to vector<8x128xf32>
    %336 = arith.addf %333, %335 : vector<8x128xf32>
    %c0_41 = arith.constant 0 : index
    %c0_42 = arith.constant 0 : index
    %337 = vector.load %arg7[%c0_41, %c0_42] : memref<8x128xf32, #tpu.memory_space<vmem>>, vector<8x128xf32>
    tpu.vector_store %arg7[%c0_41, %c0_42], %336 {strides = array<i32>} : memref<8x128xf32, #tpu.memory_space<vmem>>, vector<8x128xf32>,
    return
  }
}

</mosaic_0001>

<llo_original>
// kernel: tpu_custom_call.1
$region0: #{tpu_custom_call.1}
  #allocation0 [shape = 'u32[]', space=smem, size = 0x4, offset = 0x4, fixed_abs, tag = 'smem constant byte address 0x4 - core index']
  #allocation1 [shape = 'u32[72,128]{1,0:T(1,128)}', space=vmem, size = 0x9000, scoped, tag = 'internal scratch']
  %s0 = inlined_call_operand.vmem [shape: bf16[64,16], index: 0, kind: input, shape index: {}]
  %s1 = inlined_call_operand.vmem [shape: bf16[16,128], index: 1, kind: input, shape index: {}]
  %s2 = inlined_call_operand.vmem [shape: f32[1,128], index: 2, kind: input, shape index: {}]
  %s3 = inlined_call_operand.hbm [shape: bf16[64,256], index: 3, kind: input, shape index: {}]
  %s4 = inlined_call_operand.vmem [shape: f32[1,128], index: 4, kind: input, shape index: {}]
  %s5 = inlined_call_operand.vmem [shape: bf16[32,128], index: 5, kind: input, shape index: {}]
  %s6 = inlined_call_operand.vmem [shape: f32[1,128], index: 6, kind: input, shape index: {}]
  %s7 = inlined_call_operand.hbm [shape: f32[8,128], index: 7, kind: output, shape index: {}]
  %s8 = sld [smem:[#allocation0]]
  $region42: #{tpu_custom_call.1} parent=0
    _
  %s10 = ssub.s32 1, %s8
  %s11 = scalar_select 0, %s10, %s8
  $region1: #{tpu_custom_call.1} parent=0
    #allocation2 [shape = 'u8[32768]{0}', space=vmem, size = 0x8000, scoped, tag = 'input window, operand 3, single buffered']
    #allocation3 [shape = 's32[1]{0}', space=sflag, size = 0x4, scoped, tag = 'scoped memory for tpu_custom_call.1']
    #allocation4 [shape = 's32[1]{0}', space=sflag, size = 0x4, scoped, tag = 'scoped memory for tpu_custom_call.1']
    #allocation5 [shape = 'u8[4096]{0}', space=vmem, size = 0x1000, scoped, tag = 'output window, operand 0, single buffered']
    %12 = vsyncpa [#allocation3], 0
    %13 = vsyncpa [#allocation4], 0
    // Predicated region
    $region2: #{tpu_custom_call.1} parent=1 // pred_check
      _
    $region3: #{tpu_custom_call.1} parent=1 // pred_check_branch
      %15 = sbr.rel (0) target = $region5
    $region4: #{tpu_custom_call.1} parent=1 // pred_region
      _
    $region5: #{tpu_custom_call.1} parent=1 // pred_fallthru
      _
    // Predicated region
    $region6: #{tpu_custom_call.1} parent=1 // pred_check
      _
    $region7: #{tpu_custom_call.1} parent=1 // pred_check_branch
      %17 = sbr.rel (0) target = $region9
    $region8: #{tpu_custom_call.1} parent=1 // pred_region
      _
    $region9: #{tpu_custom_call.1} parent=1 // pred_fallthru
      _
    // Predicated region
    $region10: #{tpu_custom_call.1} parent=1 // pred_check
      _
    $region11: #{tpu_custom_call.1} parent=1 // pred_check_branch
      %19 = sbr.rel (0) target = $region13
    $region12: #{tpu_custom_call.1} parent=1 // pred_region
      _
    $region13: #{tpu_custom_call.1} parent=1 // pred_fallthru
      _
    // Predicated region
    $region14: #{tpu_custom_call.1} parent=1 // pred_check
      _
    $region15: #{tpu_custom_call.1} parent=1 // pred_check_branch
      %21 = sbr.rel (0) target = $region17
    $region16: #{tpu_custom_call.1} parent=1 // pred_region
      %23 = vsyncadd [#allocation3], 0
      %s24 = sshll.u32 %s3, 4
      %s25 = int_to_ptr.hbm [resolvable:$true] %s24
      %s26 = sshll.u32 [#allocation2], 4
      %s27 = int_to_ptr.vmem [resolvable:$true] %s26
      %32 = dma.hbm_to_vmem [thread:$0]  %s25, 1024, %s27, [#allocation3], 128, 128, 8
    $region17: #{tpu_custom_call.1} parent=1 // pred_fallthru
      _
    // Predicated region
    $region18: #{tpu_custom_call.1} parent=1 // pred_check
      _
    $region19: #{tpu_custom_call.1} parent=1 // pred_check_branch
      %34 = sbr.rel (0) target = $region21
    $region20: #{tpu_custom_call.1} parent=1 // pred_region
      _
    $region21: #{tpu_custom_call.1} parent=1 // pred_fallthru
      _
    // Predicated region
    $region22: #{tpu_custom_call.1} parent=1 // pred_check
      _
    $region23: #{tpu_custom_call.1} parent=1 // pred_check_branch
      %36 = sbr.rel (0) target = $region25
    $region24: #{tpu_custom_call.1} parent=1 // pred_region
      _
    $region25: #{tpu_custom_call.1} parent=1 // pred_fallthru
      _
    // Predicated region
    $region26: #{tpu_custom_call.1} parent=1 // pred_check
      _
    $region27: #{tpu_custom_call.1} parent=1 // pred_check_branch
      %38 = sbr.rel (0) target = $region29
    $region28: #{tpu_custom_call.1} parent=1 // pred_region
      _
    $region29: #{tpu_custom_call.1} parent=1 // pred_fallthru
      _
    // Predicated region
    $region30: #{tpu_custom_call.1} parent=1 // pred_check
      _
    $region31: #{tpu_custom_call.1} parent=1 // pred_check_branch
      %40 = sbr.rel (0) target = $region33
    $region32: #{tpu_custom_call.1} parent=1 // pred_region
      %42 = dma.done [#allocation3], 1024
    $region33: #{tpu_custom_call.1} parent=1 // pred_fallthru
      _
    %v44 = vld [vmem:[#allocation2] sm:$0xff]
    %v45 = vld [vmem:[#allocation2 + $0x8] sm:$0xff]
    %v46 = vld [vmem:[#allocation2 + $0x10] sm:$0xff]
    %v47 = vld [vmem:[#allocation2 + $0x18] sm:$0xff]
    %v48 = vld [vmem:[#allocation2 + $0x20] sm:$0xff]
    %v49 = vld [vmem:[#allocation2 + $0x28] sm:$0xff]
    %v50 = vld [vmem:[#allocation2 + $0x30] sm:$0xff]
    %v51 = vld [vmem:[#allocation2 + $0x38] sm:$0xff]
    %v52 = vld [vmem:[%s0] sm:$0xf]
    %v53 = vld [vmem:[%s0 + $0x4] sm:$0xf]
    %v54 = vld [vmem:[%s0 + $0x8] sm:$0xf]
    %v55 = vld [vmem:[%s0 + $0xc] sm:$0xf]
    %v56 = vld [vmem:[%s0 + $0x10] sm:$0xf]
    %v57 = vld [vmem:[%s0 + $0x14] sm:$0xf]
    %v58 = vld [vmem:[%s0 + $0x18] sm:$0xf]
    %v59 = vld [vmem:[%s0 + $0x1c] sm:$0xf]
    %v60 = vld [vmem:[%s1] sm:$0xf]
    %v61 = vld [vmem:[%s1 + $0x4] sm:$0xf]
    %v62 = vld [vmem:[%s2] sm:$0x1]
    %v64 = vperm.slane %v62, 0
    %v74 = vunpack.c.l.b16 %v52
    %v75 = vunpack.c.l.b16 %v53
    %v76 = vunpack.c.l.b16 %v54
    %v77 = vunpack.c.l.b16 %v55
    %v78 = vunpack.c.l.b16 %v56
    %v79 = vunpack.c.l.b16 %v57
    %v80 = vunpack.c.l.b16 %v58
    %v81 = vunpack.c.l.b16 %v59
    %v82 = vpack.c.b16 %v75, %v74
    %v83 = vpack.c.b16 %v77, %v76
    %v84 = vpack.c.b16 %v79, %v78
    %v85 = vpack.c.b16 %v81, %v80
    %v88 = vunpack.c.l.b16 %v60
    %v89 = vunpack.c.l.b16 %v61
    %v90 = vpack.c.b16 %v89, %v88
    %vm92 = vcmask 130048
    %v94 = vsel %vm92, %v82, 0
    %v97 = vsel %vm92, %v83, 0
    %v100 = vsel %vm92, %v84, 0
    %v103 = vsel %vm92, %v85, 0
    %105 = vmatpush.bf16.msra.mxu0 0
    %106 = vmatpush.bf16.msra.mxu0 0
    %107 = vmatpush.bf16.msra.mxu0 0
    %108 = vmatpush.bf16.msra.mxu0 0
    %109 = vmatpush.bf16.msra.mxu0 0
    %110 = vmatpush.bf16.msra.mxu0 0
    %111 = vmatpush.bf16.msra.mxu0 0
    %112 = vmatpush.bf16.msra.mxu0 %v90
    %113 = vmatmul.bf16.gmra.mxu0 %v94
    %v114 = vpop.f32.mrf.mxu0
    %v115 = vadd.f32 %v64, %v114
    %v116 = vpop.f32.mrf.mxu0
    %v117 = vadd.f32 %v64, %v116
    %118 = vmatmul.bf16.gmra.mxu0 %v97
    %v119 = vpop.f32.mrf.mxu0
    %v120 = vadd.f32 %v64, %v119
    %v121 = vpop.f32.mrf.mxu0
    %v122 = vadd.f32 %v64, %v121
    %123 = vmatmul.bf16.gmra.mxu0 %v100
    %v124 = vpop.f32.mrf.mxu0
    %v125 = vadd.f32 %v64, %v124
    %v126 = vpop.f32.mrf.mxu0
    %v127 = vadd.f32 %v64, %v126
    %128 = vmatmul.bf16.gmra.mxu0 %v103
    %v129 = vpop.f32.mrf.mxu0
    %v130 = vadd.f32 %v64, %v129
    %v131 = vpop.f32.mrf.mxu0
    %v132 = vadd.f32 %v64, %v131
    %133 = vdwg.mxu0
    %v134 = vld [vmem:[%s4] sm:$0x1]
    %v136 = vperm.slane %v134, 0
    %v138 = vxor.u32 %v115, 2147483648
    %v139 = vmul.f32 %v138, 1.442695
    %v140 = vpow.pop %v139
    %v141 = vadd.f32 %v140, 1.0
    %v142 = vrcp.pop %v141
    %v143 = vmul.f32 %v141, %v142
    %v144 = vsub.f32 1.0, %v143
    %v145 = vmul.f32 %v142, %v144
    %v146 = vadd.f32 %v142, %v145
    %vm147 = vweird.f32 %v141
    %vm148 = vweird.f32 %v142
    %vm149 = vmor %vm147, %vm148
    %v150 = vsel %vm149, %v142, %v146
    %v151 = vand.u32 2147483647, %v141
    %vm152 = vcmp.eq.f32.partialorder %v151, 8.507059e+37
    %v153 = vand.u32 %v141, 2147483648
    %v154 = vor.u32 1.1754944e-38, %v153
    %v155 = vsel %vm152, %v154, %v150
    %v156 = vmul.f32 1.0, %v155
    %v157 = vtanh.pop %v115
    %v158 = vmul.f32 %v156, 0.0
    %160 = vrot.lane.b32.xlu0 %v157, 32
    %v161 = vpop.permute.xlu0 %160
    %v163 = vmul.f32 %v156, %v161
    %165 = vrot.lane.b32.xlu0 %v163, 32
    %v166 = vpop.permute.xlu0 %165
    %v168 = vadd.f32 %v158, %v166
    %v169 = vtanh.pop %v168
    %171 = vrot.lane.b32.xlu0 %v169, 32
    %v172 = vpop.permute.xlu0 %171
    %v174 = vmul.f32 %v156, %v172
    %176 = vrot.lane.b32.xlu0 %v174, 64
    %v177 = vpop.permute.xlu0 %176
    %vm179 = vcmask 261120
    %v180 = vsel %vm179, %v177, 0.0
    %v181 = vpack.c.bf16 %v180, %v180
    %v190 = vunpack.c.l.b16 %v44
    %v191 = vunpack.c.h.b16 %v44
    %v192 = vunpack.c.l.b16 %v45
    %v193 = vunpack.c.h.b16 %v45
    %v194 = vunpack.c.l.b16 %v46
    %v195 = vunpack.c.h.b16 %v46
    %v196 = vunpack.c.l.b16 %v47
    %v197 = vunpack.c.h.b16 %v47
    %v198 = vunpack.c.l.b16 %v48
    %v199 = vunpack.c.h.b16 %v48
    %v200 = vunpack.c.l.b16 %v49
    %v201 = vunpack.c.h.b16 %v49
    %v202 = vunpack.c.l.b16 %v50
    %v203 = vunpack.c.h.b16 %v50
    %v204 = vunpack.c.l.b16 %v51
    %v205 = vunpack.c.h.b16 %v51
    %v206 = vpack.c.b16 %v192, %v190
    %v207 = vpack.c.b16 %v193, %v191
    %v208 = vpack.c.b16 %v196, %v194
    %v209 = vpack.c.b16 %v197, %v195
    %v210 = vpack.c.b16 %v200, %v198
    %v211 = vpack.c.b16 %v201, %v199
    %v212 = vpack.c.b16 %v204, %v202
    %v213 = vpack.c.b16 %v205, %v203
    %vm222 = vcmask 523264
    %v224 = vsel %vm222, %v181, 0
    %226 = vmatpush.bf16.msra.mxu0 0
    %227 = vmatpush.bf16.msra.mxu0 0
    %228 = vmatpush.bf16.msra.mxu0 0
    %229 = vmatpush.bf16.msra.mxu0 0
    %230 = vmatpush.bf16.msra.mxu0 %v212
    %231 = vmatpush.bf16.msra.mxu0 %v210
    %232 = vmatpush.bf16.msra.mxu0 %v208
    %233 = vmatpush.bf16.msra.mxu0 %v206
    %234 = vmatmul.bf16.gmra.mxu0 %v224
    %v235 = vpop.f32.mrf.mxu0
    %v236 = vadd.f32 0.0, %v235
    %v237 = vpop.f32.mrf.mxu0
    %238 = vdwg.mxu0
    %239 = vmatpush.bf16.msra.mxu0 0
    %240 = vmatpush.bf16.msra.mxu0 0
    %241 = vmatpush.bf16.msra.mxu0 0
    %242 = vmatpush.bf16.msra.mxu0 0
    %243 = vmatpush.bf16.msra.mxu0 %v213
    %244 = vmatpush.bf16.msra.mxu0 %v211
    %245 = vmatpush.bf16.msra.mxu0 %v209
    %246 = vmatpush.bf16.msra.mxu0 %v207
    %247 = vmatmul.bf16.gmra.mxu0 %v224
    %v248 = vpop.f32.mrf.mxu0
    %v249 = vadd.f32 0.0, %v248
    %v250 = vpop.f32.mrf.mxu0
    %251 = vdwg.mxu0
    %v252 = vadd.f32 %v249, %v136
    %v253 = vxor.u32 %v252, 2147483648
    %v254 = vmul.f32 %v253, 1.442695
    %v255 = vpow.pop %v254
    %v256 = vadd.f32 %v255, 1.0
    %v257 = vrcp.pop %v256
    %v258 = vmul.f32 %v256, %v257
    %v259 = vsub.f32 1.0, %v258
    %v260 = vmul.f32 %v257, %v259
    %v261 = vadd.f32 %v257, %v260
    %vm262 = vweird.f32 %v256
    %vm263 = vweird.f32 %v257
    %vm264 = vmor %vm262, %vm263
    %v265 = vsel %vm264, %v257, %v261
    %v266 = vand.u32 2147483647, %v256
    %vm267 = vcmp.eq.f32.partialorder %v266, 8.507059e+37
    %v268 = vand.u32 %v256, 2147483648
    %v269 = vor.u32 1.1754944e-38, %v268
    %v270 = vsel %vm267, %v269, %v265
    %v271 = vmul.f32 1.0, %v270
    %v272 = vtanh.pop %v252
    %v273 = vmul.f32 %v271, 0.0
    %275 = vrot.lane.b32.xlu0 %v272, 32
    %v276 = vpop.permute.xlu0 %275
    %v278 = vmul.f32 %v271, %v276
    %280 = vrot.lane.b32.xlu0 %v278, 32
    %v281 = vpop.permute.xlu0 %280
    %v283 = vadd.f32 %v273, %v281
    %v284 = vtanh.pop %v283
    %286 = vrot.lane.b32.xlu0 %v284, 32
    %v287 = vpop.permute.xlu0 %286
    %v289 = vmul.f32 %v271, %v287
    %v290 = vadd.f32 %v117, %v236
    %v291 = vxor.u32 %v290, 2147483648
    %v292 = vmul.f32 %v291, 1.442695
    %v293 = vpow.pop %v292
    %v294 = vadd.f32 %v293, 1.0
    %v295 = vrcp.pop %v294
    %v296 = vmul.f32 %v294, %v295
    %v297 = vsub.f32 1.0, %v296
    %v298 = vmul.f32 %v295, %v297
    %v299 = vadd.f32 %v295, %v298
    %vm300 = vweird.f32 %v294
    %vm301 = vweird.f32 %v295
    %vm302 = vmor %vm300, %vm301
    %v303 = vsel %vm302, %v295, %v299
    %v304 = vand.u32 2147483647, %v294
    %vm305 = vcmp.eq.f32.partialorder %v304, 8.507059e+37
    %v306 = vand.u32 %v294, 2147483648
    %v307 = vor.u32 1.1754944e-38, %v306
    %v308 = vsel %vm305, %v307, %v303
    %v309 = vmul.f32 1.0, %v308
    %v310 = vtanh.pop %v290
    %v311 = vmul.f32 %v309, %v168
    %313 = vrot.lane.b32.xlu0 %v310, 32
    %v314 = vpop.permute.xlu0 %313
    %v316 = vmul.f32 %v309, %v314
    %318 = vrot.lane.b32.xlu0 %v316, 32
    %v319 = vpop.permute.xlu0 %318
    %v321 = vadd.f32 %v311, %v319
    %v322 = vtanh.pop %v321
    %324 = vrot.lane.b32.xlu0 %v322, 32
    %v325 = vpop.permute.xlu0 %324
    %v327 = vmul.f32 %v309, %v325
    %329 = vrot.lane.b32.xlu0 %v327, 64
    %v330 = vpop.permute.xlu0 %329
    %333 = vrot.lane.b32.xlu0 %v289, 96
    %v334 = vpop.permute.xlu0 %333
    %v336 = vsel %vm179, %v330, %v334
    %v337 = vpack.c.bf16 %v336, %v336
    %v339 = vsel %vm222, %v337, 0
    %341 = vmatpush.bf16.msra.mxu0 0
    %342 = vmatpush.bf16.msra.mxu0 0
    %343 = vmatpush.bf16.msra.mxu0 0
    %344 = vmatpush.bf16.msra.mxu0 0
    %345 = vmatpush.bf16.msra.mxu0 %v212
    %346 = vmatpush.bf16.msra.mxu0 %v210
    %347 = vmatpush.bf16.msra.mxu0 %v208
    %348 = vmatpush.bf16.msra.mxu0 %v206
    %349 = vmatmul.bf16.gmra.mxu0 %v339
    %v350 = vpop.f32.mrf.mxu0
    %v351 = vadd.f32 0.0, %v350
    %v352 = vpop.f32.mrf.mxu0
    %353 = vdwg.mxu0
    %354 = vmatpush.bf16.msra.mxu0 0
    %355 = vmatpush.bf16.msra.mxu0 0
    %356 = vmatpush.bf16.msra.mxu0 0
    %357 = vmatpush.bf16.msra.mxu0 0
    %358 = vmatpush.bf16.msra.mxu0 %v213
    %359 = vmatpush.bf16.msra.mxu0 %v211
    %360 = vmatpush.bf16.msra.mxu0 %v209
    %361 = vmatpush.bf16.msra.mxu0 %v207
    %362 = vmatmul.bf16.gmra.mxu0 %v339
    %v363 = vpop.f32.mrf.mxu0
    %v364 = vadd.f32 0.0, %v363
    %v365 = vpop.f32.mrf.mxu0
    %366 = vdwg.mxu0
    %v367 = vadd.f32 %v364, %v136
    %v368 = vxor.u32 %v367, 2147483648
    %v369 = vmul.f32 %v368, 1.442695
    %v370 = vpow.pop %v369
    %v371 = vadd.f32 %v370, 1.0
    %v372 = vrcp.pop %v371
    %v373 = vmul.f32 %v371, %v372
    %v374 = vsub.f32 1.0, %v373
    %v375 = vmul.f32 %v372, %v374
    %v376 = vadd.f32 %v372, %v375
    %vm377 = vweird.f32 %v371
    %vm378 = vweird.f32 %v372
    %vm379 = vmor %vm377, %vm378
    %v380 = vsel %vm379, %v372, %v376
    %v381 = vand.u32 2147483647, %v371
    %vm382 = vcmp.eq.f32.partialorder %v381, 8.507059e+37
    %v383 = vand.u32 %v371, 2147483648
    %v384 = vor.u32 1.1754944e-38, %v383
    %v385 = vsel %vm382, %v384, %v380
    %v386 = vmul.f32 1.0, %v385
    %v387 = vtanh.pop %v367
    %v388 = vmul.f32 %v386, %v283
    %390 = vrot.lane.b32.xlu0 %v387, 32
    %v391 = vpop.permute.xlu0 %390
    %v393 = vmul.f32 %v386, %v391
    %395 = vrot.lane.b32.xlu0 %v393, 32
    %v396 = vpop.permute.xlu0 %395
    %v398 = vadd.f32 %v388, %v396
    %v399 = vtanh.pop %v398
    %401 = vrot.lane.b32.xlu0 %v399, 32
    %v402 = vpop.permute.xlu0 %401
    %v404 = vmul.f32 %v386, %v402
    %v405 = vadd.f32 %v120, %v351
    %v406 = vxor.u32 %v405, 2147483648
    %v407 = vmul.f32 %v406, 1.442695
    %v408 = vpow.pop %v407
    %v409 = vadd.f32 %v408, 1.0
    %v410 = vrcp.pop %v409
    %v411 = vmul.f32 %v409, %v410
    %v412 = vsub.f32 1.0, %v411
    %v413 = vmul.f32 %v410, %v412
    %v414 = vadd.f32 %v410, %v413
    %vm415 = vweird.f32 %v409
    %vm416 = vweird.f32 %v410
    %vm417 = vmor %vm415, %vm416
    %v418 = vsel %vm417, %v410, %v414
    %v419 = vand.u32 2147483647, %v409
    %vm420 = vcmp.eq.f32.partialorder %v419, 8.507059e+37
    %v421 = vand.u32 %v409, 2147483648
    %v422 = vor.u32 1.1754944e-38, %v421
    %v423 = vsel %vm420, %v422, %v418
    %v424 = vmul.f32 1.0, %v423
    %v425 = vtanh.pop %v405
    %v426 = vmul.f32 %v424, %v321
    %428 = vrot.lane.b32.xlu0 %v425, 32
    %v429 = vpop.permute.xlu0 %428
    %v431 = vmul.f32 %v424, %v429
    %433 = vrot.lane.b32.xlu0 %v431, 32
    %v434 = vpop.permute.xlu0 %433
    %v436 = vadd.f32 %v426, %v434
    %v437 = vtanh.pop %v436
    %439 = vrot.lane.b32.xlu0 %v437, 32
    %v440 = vpop.permute.xlu0 %439
    %v442 = vmul.f32 %v424, %v440
    %444 = vrot.lane.b32.xlu0 %v442, 64
    %v445 = vpop.permute.xlu0 %444
    %448 = vrot.lane.b32.xlu0 %v404, 96
    %v449 = vpop.permute.xlu0 %448
    %v451 = vsel %vm179, %v445, %v449
    %v452 = vpack.c.bf16 %v451, %v451
    %v454 = vsel %vm222, %v452, 0
    %456 = vmatpush.bf16.msra.mxu0 0
    %457 = vmatpush.bf16.msra.mxu0 0
    %458 = vmatpush.bf16.msra.mxu0 0
    %459 = vmatpush.bf16.msra.mxu0 0
    %460 = vmatpush.bf16.msra.mxu0 %v212
    %461 = vmatpush.bf16.msra.mxu0 %v210
    %462 = vmatpush.bf16.msra.mxu0 %v208
    %463 = vmatpush.bf16.msra.mxu0 %v206
    %464 = vmatmul.bf16.gmra.mxu0 %v454
    %v465 = vpop.f32.mrf.mxu0
    %v466 = vadd.f32 0.0, %v465
    %v467 = vpop.f32.mrf.mxu0
    %468 = vdwg.mxu0
    %469 = vmatpush.bf16.msra.mxu0 0
    %470 = vmatpush.bf16.msra.mxu0 0
    %471 = vmatpush.bf16.msra.mxu0 0
    %472 = vmatpush.bf16.msra.mxu0 0
    %473 = vmatpush.bf16.msra.mxu0 %v213
    %474 = vmatpush.bf16.msra.mxu0 %v211
    %475 = vmatpush.bf16.msra.mxu0 %v209
    %476 = vmatpush.bf16.msra.mxu0 %v207
    %477 = vmatmul.bf16.gmra.mxu0 %v454
    %v478 = vpop.f32.mrf.mxu0
    %v479 = vadd.f32 0.0, %v478
    %v480 = vpop.f32.mrf.mxu0
    %481 = vdwg.mxu0
    %v482 = vadd.f32 %v479, %v136
    %v483 = vxor.u32 %v482, 2147483648
    %v484 = vmul.f32 %v483, 1.442695
    %v485 = vpow.pop %v484
    %v486 = vadd.f32 %v485, 1.0
    %v487 = vrcp.pop %v486
    %v488 = vmul.f32 %v486, %v487
    %v489 = vsub.f32 1.0, %v488
    %v490 = vmul.f32 %v487, %v489
    %v491 = vadd.f32 %v487, %v490
    %vm492 = vweird.f32 %v486
    %vm493 = vweird.f32 %v487
    %vm494 = vmor %vm492, %vm493
    %v495 = vsel %vm494, %v487, %v491
    %v496 = vand.u32 2147483647, %v486
    %vm497 = vcmp.eq.f32.partialorder %v496, 8.507059e+37
    %v498 = vand.u32 %v486, 2147483648
    %v499 = vor.u32 1.1754944e-38, %v498
    %v500 = vsel %vm497, %v499, %v495
    %v501 = vmul.f32 1.0, %v500
    %v502 = vtanh.pop %v482
    %v503 = vmul.f32 %v501, %v398
    %505 = vrot.lane.b32.xlu0 %v502, 32
    %v506 = vpop.permute.xlu0 %505
    %v508 = vmul.f32 %v501, %v506
    %510 = vrot.lane.b32.xlu0 %v508, 32
    %v511 = vpop.permute.xlu0 %510
    %v513 = vadd.f32 %v503, %v511
    %v514 = vtanh.pop %v513
    %516 = vrot.lane.b32.xlu0 %v514, 32
    %v517 = vpop.permute.xlu0 %516
    %v519 = vmul.f32 %v501, %v517
    %v520 = vadd.f32 %v122, %v466
    %v521 = vxor.u32 %v520, 2147483648
    %v522 = vmul.f32 %v521, 1.442695
    %v523 = vpow.pop %v522
    %v524 = vadd.f32 %v523, 1.0
    %v525 = vrcp.pop %v524
    %v526 = vmul.f32 %v524, %v525
    %v527 = vsub.f32 1.0, %v526
    %v528 = vmul.f32 %v525, %v527
    %v529 = vadd.f32 %v525, %v528
    %vm530 = vweird.f32 %v524
    %vm531 = vweird.f32 %v525
    %vm532 = vmor %vm530, %vm531
    %v533 = vsel %vm532, %v525, %v529
    %v534 = vand.u32 2147483647, %v524
    %vm535 = vcmp.eq.f32.partialorder %v534, 8.507059e+37
    %v536 = vand.u32 %v524, 2147483648
    %v537 = vor.u32 1.1754944e-38, %v536
    %v538 = vsel %vm535, %v537, %v533
    %v539 = vmul.f32 1.0, %v538
    %v540 = vtanh.pop %v520
    %v541 = vmul.f32 %v539, %v436
    %543 = vrot.lane.b32.xlu0 %v540, 32
    %v544 = vpop.permute.xlu0 %543
    %v546 = vmul.f32 %v539, %v544
    %548 = vrot.lane.b32.xlu0 %v546, 32
    %v549 = vpop.permute.xlu0 %548
    %v551 = vadd.f32 %v541, %v549
    %v552 = vtanh.pop %v551
    %554 = vrot.lane.b32.xlu0 %v552, 32
    %v555 = vpop.permute.xlu0 %554
    %v557 = vmul.f32 %v539, %v555
    %559 = vrot.lane.b32.xlu0 %v557, 64
    %v560 = vpop.permute.xlu0 %559
    %563 = vrot.lane.b32.xlu0 %v519, 96
    %v564 = vpop.permute.xlu0 %563
    %v566 = vsel %vm179, %v560, %v564
    %v567 = vpack.c.bf16 %v566, %v566
    %v569 = vsel %vm222, %v567, 0
    %571 = vmatpush.bf16.msra.mxu0 0
    %572 = vmatpush.bf16.msra.mxu0 0
    %573 = vmatpush.bf16.msra.mxu0 0
    %574 = vmatpush.bf16.msra.mxu0 0
    %575 = vmatpush.bf16.msra.mxu0 %v212
    %576 = vmatpush.bf16.msra.mxu0 %v210
    %577 = vmatpush.bf16.msra.mxu0 %v208
    %578 = vmatpush.bf16.msra.mxu0 %v206
    %579 = vmatmul.bf16.gmra.mxu0 %v569
    %v580 = vpop.f32.mrf.mxu0
    %v581 = vadd.f32 0.0, %v580
    %v582 = vpop.f32.mrf.mxu0
    %583 = vdwg.mxu0
    %584 = vmatpush.bf16.msra.mxu0 0
    %585 = vmatpush.bf16.msra.mxu0 0
    %586 = vmatpush.bf16.msra.mxu0 0
    %587 = vmatpush.bf16.msra.mxu0 0
    %588 = vmatpush.bf16.msra.mxu0 %v213
    %589 = vmatpush.bf16.msra.mxu0 %v211
    %590 = vmatpush.bf16.msra.mxu0 %v209
    %591 = vmatpush.bf16.msra.mxu0 %v207
    %592 = vmatmul.bf16.gmra.mxu0 %v569
    %v593 = vpop.f32.mrf.mxu0
    %v594 = vadd.f32 0.0, %v593
    %v595 = vpop.f32.mrf.mxu0
    %596 = vdwg.mxu0
    %v597 = vadd.f32 %v594, %v136
    %v598 = vxor.u32 %v597, 2147483648
    %v599 = vmul.f32 %v598, 1.442695
    %v600 = vpow.pop %v599
    %v601 = vadd.f32 %v600, 1.0
    %v602 = vrcp.pop %v601
    %v603 = vmul.f32 %v601, %v602
    %v604 = vsub.f32 1.0, %v603
    %v605 = vmul.f32 %v602, %v604
    %v606 = vadd.f32 %v602, %v605
    %vm607 = vweird.f32 %v601
    %vm608 = vweird.f32 %v602
    %vm609 = vmor %vm607, %vm608
    %v610 = vsel %vm609, %v602, %v606
    %v611 = vand.u32 2147483647, %v601
    %vm612 = vcmp.eq.f32.partialorder %v611, 8.507059e+37
    %v613 = vand.u32 %v601, 2147483648
    %v614 = vor.u32 1.1754944e-38, %v613
    %v615 = vsel %vm612, %v614, %v610
    %v616 = vmul.f32 1.0, %v615
    %v617 = vtanh.pop %v597
    %v618 = vmul.f32 %v616, %v513
    %620 = vrot.lane.b32.xlu0 %v617, 32
    %v621 = vpop.permute.xlu0 %620
    %v623 = vmul.f32 %v616, %v621
    %625 = vrot.lane.b32.xlu0 %v623, 32
    %v626 = vpop.permute.xlu0 %625
    %v628 = vadd.f32 %v618, %v626
    %v629 = vtanh.pop %v628
    %631 = vrot.lane.b32.xlu0 %v629, 32
    %v632 = vpop.permute.xlu0 %631
    %v634 = vmul.f32 %v616, %v632
    %v635 = vadd.f32 %v125, %v581
    %v636 = vxor.u32 %v635, 2147483648
    %v637 = vmul.f32 %v636, 1.442695
    %v638 = vpow.pop %v637
    %v639 = vadd.f32 %v638, 1.0
    %v640 = vrcp.pop %v639
    %v641 = vmul.f32 %v639, %v640
    %v642 = vsub.f32 1.0, %v641
    %v643 = vmul.f32 %v640, %v642
    %v644 = vadd.f32 %v640, %v643
    %vm645 = vweird.f32 %v639
    %vm646 = vweird.f32 %v640
    %vm647 = vmor %vm645, %vm646
    %v648 = vsel %vm647, %v640, %v644
    %v649 = vand.u32 2147483647, %v639
    %vm650 = vcmp.eq.f32.partialorder %v649, 8.507059e+37
    %v651 = vand.u32 %v639, 2147483648
    %v652 = vor.u32 1.1754944e-38, %v651
    %v653 = vsel %vm650, %v652, %v648
    %v654 = vmul.f32 1.0, %v653
    %v655 = vtanh.pop %v635
    %v656 = vmul.f32 %v654, %v551
    %658 = vrot.lane.b32.xlu0 %v655, 32
    %v659 = vpop.permute.xlu0 %658
    %v661 = vmul.f32 %v654, %v659
    %663 = vrot.lane.b32.xlu0 %v661, 32
    %v664 = vpop.permute.xlu0 %663
    %v666 = vadd.f32 %v656, %v664
    %v667 = vtanh.pop %v666
    %669 = vrot.lane.b32.xlu0 %v667, 32
    %v670 = vpop.permute.xlu0 %669
    %v672 = vmul.f32 %v654, %v670
    %674 = vrot.lane.b32.xlu0 %v672, 64
    %v675 = vpop.permute.xlu0 %674
    %678 = vrot.lane.b32.xlu0 %v634, 96
    %v679 = vpop.permute.xlu0 %678
    %v681 = vsel %vm179, %v675, %v679
    %v682 = vpack.c.bf16 %v681, %v681
    %v684 = vsel %vm222, %v682, 0
    %686 = vmatpush.bf16.msra.mxu0 0
    %687 = vmatpush.bf16.msra.mxu0 0
    %688 = vmatpush.bf16.msra.mxu0 0
    %689 = vmatpush.bf16.msra.mxu0 0
    %690 = vmatpush.bf16.msra.mxu0 %v212
    %691 = vmatpush.bf16.msra.mxu0 %v210
    %692 = vmatpush.bf16.msra.mxu0 %v208
    %693 = vmatpush.bf16.msra.mxu0 %v206
    %694 = vmatmul.bf16.gmra.mxu0 %v684
    %v695 = vpop.f32.mrf.mxu0
    %v696 = vadd.f32 0.0, %v695
    %v697 = vpop.f32.mrf.mxu0
    %698 = vdwg.mxu0
    %699 = vmatpush.bf16.msra.mxu0 0
    %700 = vmatpush.bf16.msra.mxu0 0
    %701 = vmatpush.bf16.msra.mxu0 0
    %702 = vmatpush.bf16.msra.mxu0 0
    %703 = vmatpush.bf16.msra.mxu0 %v213
    %704 = vmatpush.bf16.msra.mxu0 %v211
    %705 = vmatpush.bf16.msra.mxu0 %v209
    %706 = vmatpush.bf16.msra.mxu0 %v207
    %707 = vmatmul.bf16.gmra.mxu0 %v684
    %v708 = vpop.f32.mrf.mxu0
    %v709 = vadd.f32 0.0, %v708
    %v710 = vpop.f32.mrf.mxu0
    %711 = vdwg.mxu0
    %v712 = vadd.f32 %v709, %v136
    %v713 = vxor.u32 %v712, 2147483648
    %v714 = vmul.f32 %v713, 1.442695
    %v715 = vpow.pop %v714
    %v716 = vadd.f32 %v715, 1.0
    %v717 = vrcp.pop %v716
    %v718 = vmul.f32 %v716, %v717
    %v719 = vsub.f32 1.0, %v718
    %v720 = vmul.f32 %v717, %v719
    %v721 = vadd.f32 %v717, %v720
    %vm722 = vweird.f32 %v716
    %vm723 = vweird.f32 %v717
    %vm724 = vmor %vm722, %vm723
    %v725 = vsel %vm724, %v717, %v721
    %v726 = vand.u32 2147483647, %v716
    %vm727 = vcmp.eq.f32.partialorder %v726, 8.507059e+37
    %v728 = vand.u32 %v716, 2147483648
    %v729 = vor.u32 1.1754944e-38, %v728
    %v730 = vsel %vm727, %v729, %v725
    %v731 = vmul.f32 1.0, %v730
    %v732 = vtanh.pop %v712
    %v733 = vmul.f32 %v731, %v628
    %735 = vrot.lane.b32.xlu0 %v732, 32
    %v736 = vpop.permute.xlu0 %735
    %v738 = vmul.f32 %v731, %v736
    %740 = vrot.lane.b32.xlu0 %v738, 32
    %v741 = vpop.permute.xlu0 %740
    %v743 = vadd.f32 %v733, %v741
    %v744 = vtanh.pop %v743
    %746 = vrot.lane.b32.xlu0 %v744, 32
    %v747 = vpop.permute.xlu0 %746
    %v749 = vmul.f32 %v731, %v747
    %v750 = vadd.f32 %v127, %v696
    %v751 = vxor.u32 %v750, 2147483648
    %v752 = vmul.f32 %v751, 1.442695
    %v753 = vpow.pop %v752
    %v754 = vadd.f32 %v753, 1.0
    %v755 = vrcp.pop %v754
    %v756 = vmul.f32 %v754, %v755
    %v757 = vsub.f32 1.0, %v756
    %v758 = vmul.f32 %v755, %v757
    %v759 = vadd.f32 %v755, %v758
    %vm760 = vweird.f32 %v754
    %vm761 = vweird.f32 %v755
    %vm762 = vmor %vm760, %vm761
    %v763 = vsel %vm762, %v755, %v759
    %v764 = vand.u32 2147483647, %v754
    %vm765 = vcmp.eq.f32.partialorder %v764, 8.507059e+37
    %v766 = vand.u32 %v754, 2147483648
    %v767 = vor.u32 1.1754944e-38, %v766
    %v768 = vsel %vm765, %v767, %v763
    %v769 = vmul.f32 1.0, %v768
    %v770 = vtanh.pop %v750
    %v771 = vmul.f32 %v769, %v666
    %773 = vrot.lane.b32.xlu0 %v770, 32
    %v774 = vpop.permute.xlu0 %773
    %v776 = vmul.f32 %v769, %v774
    %778 = vrot.lane.b32.xlu0 %v776, 32
    %v779 = vpop.permute.xlu0 %778
    %v781 = vadd.f32 %v771, %v779
    %v782 = vtanh.pop %v781
    %784 = vrot.lane.b32.xlu0 %v782, 32
    %v785 = vpop.permute.xlu0 %784
    %v787 = vmul.f32 %v769, %v785
    %789 = vrot.lane.b32.xlu0 %v787, 64
    %v790 = vpop.permute.xlu0 %789
    %793 = vrot.lane.b32.xlu0 %v749, 96
    %v794 = vpop.permute.xlu0 %793
    %v796 = vsel %vm179, %v790, %v794
    %v797 = vpack.c.bf16 %v796, %v796
    %v799 = vsel %vm222, %v797, 0
    %801 = vmatpush.bf16.msra.mxu0 0
    %802 = vmatpush.bf16.msra.mxu0 0
    %803 = vmatpush.bf16.msra.mxu0 0
    %804 = vmatpush.bf16.msra.mxu0 0
    %805 = vmatpush.bf16.msra.mxu0 %v212
    %806 = vmatpush.bf16.msra.mxu0 %v210
    %807 = vmatpush.bf16.msra.mxu0 %v208
    %808 = vmatpush.bf16.msra.mxu0 %v206
    %809 = vmatmul.bf16.gmra.mxu0 %v799
    %v810 = vpop.f32.mrf.mxu0
    %v811 = vadd.f32 0.0, %v810
    %v812 = vpop.f32.mrf.mxu0
    %813 = vdwg.mxu0
    %814 = vmatpush.bf16.msra.mxu0 0
    %815 = vmatpush.bf16.msra.mxu0 0
    %816 = vmatpush.bf16.msra.mxu0 0
    %817 = vmatpush.bf16.msra.mxu0 0
    %818 = vmatpush.bf16.msra.mxu0 %v213
    %819 = vmatpush.bf16.msra.mxu0 %v211
    %820 = vmatpush.bf16.msra.mxu0 %v209
    %821 = vmatpush.bf16.msra.mxu0 %v207
    %822 = vmatmul.bf16.gmra.mxu0 %v799
    %v823 = vpop.f32.mrf.mxu0
    %v824 = vadd.f32 0.0, %v823
    %v825 = vpop.f32.mrf.mxu0
    %826 = vdwg.mxu0
    %v827 = vadd.f32 %v824, %v136
    %v828 = vxor.u32 %v827, 2147483648
    %v829 = vmul.f32 %v828, 1.442695
    %v830 = vpow.pop %v829
    %v831 = vadd.f32 %v830, 1.0
    %v832 = vrcp.pop %v831
    %v833 = vmul.f32 %v831, %v832
    %v834 = vsub.f32 1.0, %v833
    %v835 = vmul.f32 %v832, %v834
    %v836 = vadd.f32 %v832, %v835
    %vm837 = vweird.f32 %v831
    %vm838 = vweird.f32 %v832
    %vm839 = vmor %vm837, %vm838
    %v840 = vsel %vm839, %v832, %v836
    %v841 = vand.u32 2147483647, %v831
    %vm842 = vcmp.eq.f32.partialorder %v841, 8.507059e+37
    %v843 = vand.u32 %v831, 2147483648
    %v844 = vor.u32 1.1754944e-38, %v843
    %v845 = vsel %vm842, %v844, %v840
    %v846 = vmul.f32 1.0, %v845
    %v847 = vtanh.pop %v827
    %v848 = vmul.f32 %v846, %v743
    %850 = vrot.lane.b32.xlu0 %v847, 32
    %v851 = vpop.permute.xlu0 %850
    %v853 = vmul.f32 %v846, %v851
    %855 = vrot.lane.b32.xlu0 %v853, 32
    %v856 = vpop.permute.xlu0 %855
    %v858 = vadd.f32 %v848, %v856
    %v859 = vtanh.pop %v858
    %861 = vrot.lane.b32.xlu0 %v859, 32
    %v862 = vpop.permute.xlu0 %861
    %v864 = vmul.f32 %v846, %v862
    %v865 = vadd.f32 %v130, %v811
    %v866 = vxor.u32 %v865, 2147483648
    %v867 = vmul.f32 %v866, 1.442695
    %v868 = vpow.pop %v867
    %v869 = vadd.f32 %v868, 1.0
    %v870 = vrcp.pop %v869
    %v871 = vmul.f32 %v869, %v870
    %v872 = vsub.f32 1.0, %v871
    %v873 = vmul.f32 %v870, %v872
    %v874 = vadd.f32 %v870, %v873
    %vm875 = vweird.f32 %v869
    %vm876 = vweird.f32 %v870
    %vm877 = vmor %vm875, %vm876
    %v878 = vsel %vm877, %v870, %v874
    %v879 = vand.u32 2147483647, %v869
    %vm880 = vcmp.eq.f32.partialorder %v879, 8.507059e+37
    %v881 = vand.u32 %v869, 2147483648
    %v882 = vor.u32 1.1754944e-38, %v881
    %v883 = vsel %vm880, %v882, %v878
    %v884 = vmul.f32 1.0, %v883
    %v885 = vtanh.pop %v865
    %v886 = vmul.f32 %v884, %v781
    %888 = vrot.lane.b32.xlu0 %v885, 32
    %v889 = vpop.permute.xlu0 %888
    %v891 = vmul.f32 %v884, %v889
    %893 = vrot.lane.b32.xlu0 %v891, 32
    %v894 = vpop.permute.xlu0 %893
    %v896 = vadd.f32 %v886, %v894
    %v897 = vtanh.pop %v896
    %899 = vrot.lane.b32.xlu0 %v897, 32
    %v900 = vpop.permute.xlu0 %899
    %v902 = vmul.f32 %v884, %v900
    %904 = vrot.lane.b32.xlu0 %v902, 64
    %v905 = vpop.permute.xlu0 %904
    %908 = vrot.lane.b32.xlu0 %v864, 96
    %v909 = vpop.permute.xlu0 %908
    %v911 = vsel %vm179, %v905, %v909
    %v912 = vpack.c.bf16 %v911, %v911
    %v914 = vsel %vm222, %v912, 0
    %916 = vmatpush.bf16.msra.mxu0 0
    %917 = vmatpush.bf16.msra.mxu0 0
    %918 = vmatpush.bf16.msra.mxu0 0
    %919 = vmatpush.bf16.msra.mxu0 0
    %920 = vmatpush.bf16.msra.mxu0 %v212
    %921 = vmatpush.bf16.msra.mxu0 %v210
    %922 = vmatpush.bf16.msra.mxu0 %v208
    %923 = vmatpush.bf16.msra.mxu0 %v206
    %924 = vmatmul.bf16.gmra.mxu0 %v914
    %v925 = vpop.f32.mrf.mxu0
    %v926 = vadd.f32 0.0, %v925
    %v927 = vpop.f32.mrf.mxu0
    %928 = vdwg.mxu0
    %929 = vmatpush.bf16.msra.mxu0 0
    %930 = vmatpush.bf16.msra.mxu0 0
    %931 = vmatpush.bf16.msra.mxu0 0
    %932 = vmatpush.bf16.msra.mxu0 0
    %933 = vmatpush.bf16.msra.mxu0 %v213
    %934 = vmatpush.bf16.msra.mxu0 %v211
    %935 = vmatpush.bf16.msra.mxu0 %v209
    %936 = vmatpush.bf16.msra.mxu0 %v207
    %937 = vmatmul.bf16.gmra.mxu0 %v914
    %v938 = vpop.f32.mrf.mxu0
    %v939 = vadd.f32 0.0, %v938
    %v940 = vpop.f32.mrf.mxu0
    %941 = vdwg.mxu0
    %v942 = vadd.f32 %v939, %v136
    %v943 = vxor.u32 %v942, 2147483648
    %v944 = vmul.f32 %v943, 1.442695
    %v945 = vpow.pop %v944
    %v946 = vadd.f32 %v945, 1.0
    %v947 = vrcp.pop %v946
    %v948 = vmul.f32 %v946, %v947
    %v949 = vsub.f32 1.0, %v948
    %v950 = vmul.f32 %v947, %v949
    %v951 = vadd.f32 %v947, %v950
    %vm952 = vweird.f32 %v946
    %vm953 = vweird.f32 %v947
    %vm954 = vmor %vm952, %vm953
    %v955 = vsel %vm954, %v947, %v951
    %v956 = vand.u32 2147483647, %v946
    %vm957 = vcmp.eq.f32.partialorder %v956, 8.507059e+37
    %v958 = vand.u32 %v946, 2147483648
    %v959 = vor.u32 1.1754944e-38, %v958
    %v960 = vsel %vm957, %v959, %v955
    %v961 = vmul.f32 1.0, %v960
    %v962 = vtanh.pop %v942
    %v963 = vmul.f32 %v961, %v858
    %965 = vrot.lane.b32.xlu0 %v962, 32
    %v966 = vpop.permute.xlu0 %965
    %v968 = vmul.f32 %v961, %v966
    %970 = vrot.lane.b32.xlu0 %v968, 32
    %v971 = vpop.permute.xlu0 %970
    %v973 = vadd.f32 %v963, %v971
    %v974 = vtanh.pop %v973
    %976 = vrot.lane.b32.xlu0 %v974, 32
    %v977 = vpop.permute.xlu0 %976
    %v979 = vmul.f32 %v961, %v977
    %v980 = vadd.f32 %v132, %v926
    %v981 = vxor.u32 %v980, 2147483648
    %v982 = vmul.f32 %v981, 1.442695
    %v983 = vpow.pop %v982
    %v984 = vadd.f32 %v983, 1.0
    %v985 = vrcp.pop %v984
    %v986 = vmul.f32 %v984, %v985
    %v987 = vsub.f32 1.0, %v986
    %v988 = vmul.f32 %v985, %v987
    %v989 = vadd.f32 %v985, %v988
    %vm990 = vweird.f32 %v984
    %vm991 = vweird.f32 %v985
    %vm992 = vmor %vm990, %vm991
    %v993 = vsel %vm992, %v985, %v989
    %v994 = vand.u32 2147483647, %v984
    %vm995 = vcmp.eq.f32.partialorder %v994, 8.507059e+37
    %v996 = vand.u32 %v984, 2147483648
    %v997 = vor.u32 1.1754944e-38, %v996
    %v998 = vsel %vm995, %v997, %v993
    %v999 = vmul.f32 1.0, %v998
    %v1000 = vtanh.pop %v980
    %v1001 = vmul.f32 %v999, %v896
    %1003 = vrot.lane.b32.xlu0 %v1000, 32
    %v1004 = vpop.permute.xlu0 %1003
    %v1006 = vmul.f32 %v999, %v1004
    %1008 = vrot.lane.b32.xlu0 %v1006, 32
    %v1009 = vpop.permute.xlu0 %1008
    %v1011 = vadd.f32 %v1001, %v1009
    %v1012 = vtanh.pop %v1011
    %1014 = vrot.lane.b32.xlu0 %v1012, 32
    %v1015 = vpop.permute.xlu0 %1014
    %v1017 = vmul.f32 %v999, %v1015
    %1019 = vrot.lane.b32.xlu0 %v1017, 64
    %v1020 = vpop.permute.xlu0 %1019
    %1023 = vrot.lane.b32.xlu0 %v979, 96
    %v1024 = vpop.permute.xlu0 %1023
    %v1026 = vsel %vm179, %v1020, %v1024
    %v1027 = vpack.c.bf16 %v1026, %v1026
    %v1029 = vsel %vm222, %v1027, 0
    %1031 = vmatpush.bf16.msra.mxu0 0
    %1032 = vmatpush.bf16.msra.mxu0 0
    %1033 = vmatpush.bf16.msra.mxu0 0
    %1034 = vmatpush.bf16.msra.mxu0 0
    %1035 = vmatpush.bf16.msra.mxu0 %v213
    %1036 = vmatpush.bf16.msra.mxu0 %v211
    %1037 = vmatpush.bf16.msra.mxu0 %v209
    %1038 = vmatpush.bf16.msra.mxu0 %v207
    %1039 = vmatmul.bf16.gmra.mxu0 %v1029
    %v1040 = vpop.f32.mrf.mxu0
    %v1041 = vadd.f32 0.0, %v1040
    %v1042 = vpop.f32.mrf.mxu0
    %1043 = vdwg.mxu0
    %v1044 = vadd.f32 %v1041, %v136
    %v1045 = vxor.u32 %v1044, 2147483648
    %v1046 = vmul.f32 %v1045, 1.442695
    %v1047 = vpow.pop %v1046
    %v1048 = vadd.f32 %v1047, 1.0
    %v1049 = vrcp.pop %v1048
    %v1050 = vmul.f32 %v1048, %v1049
    %v1051 = vsub.f32 1.0, %v1050
    %v1052 = vmul.f32 %v1049, %v1051
    %v1053 = vadd.f32 %v1049, %v1052
    %vm1054 = vweird.f32 %v1048
    %vm1055 = vweird.f32 %v1049
    %vm1056 = vmor %vm1054, %vm1055
    %v1057 = vsel %vm1056, %v1049, %v1053
    %v1058 = vand.u32 2147483647, %v1048
    %vm1059 = vcmp.eq.f32.partialorder %v1058, 8.507059e+37
    %v1060 = vand.u32 %v1048, 2147483648
    %v1061 = vor.u32 1.1754944e-38, %v1060
    %v1062 = vsel %vm1059, %v1061, %v1057
    %v1063 = vmul.f32 1.0, %v1062
    %v1064 = vtanh.pop %v1044
    %v1065 = vmul.f32 %v1063, %v973
    %1067 = vrot.lane.b32.xlu0 %v1064, 32
    %v1068 = vpop.permute.xlu0 %1067
    %v1070 = vmul.f32 %v1063, %v1068
    %1072 = vrot.lane.b32.xlu0 %v1070, 32
    %v1073 = vpop.permute.xlu0 %1072
    %v1075 = vadd.f32 %v1065, %v1073
    %v1076 = vtanh.pop %v1075
    %1078 = vrot.lane.b32.xlu0 %v1076, 32
    %v1079 = vpop.permute.xlu0 %1078
    %v1081 = vmul.f32 %v1063, %v1079
    %v1082 = vpack.c.bf16 %v1081, %v1081
    %v1083 = vld [vmem:[%s5] sm:$0xf]
    %v1084 = vld [vmem:[%s5 + $0x4] sm:$0xf]
    %v1085 = vld [vmem:[%s5 + $0x8] sm:$0xf]
    %v1086 = vld [vmem:[%s5 + $0xc] sm:$0xf]
    %v1087 = vld [vmem:[%s6] sm:$0x1]
    %v1089 = vperm.slane %v1087, 0
    %1092 = vrot.lane.b32.xlu0 %v1082, 64
    %v1093 = vpop.permute.xlu0 %1092
    %v1098 = vunpack.c.l.b16 %v1083
    %v1099 = vunpack.c.l.b16 %v1084
    %v1100 = vunpack.c.l.b16 %v1085
    %v1101 = vunpack.c.l.b16 %v1086
    %v1102 = vpack.c.b16 %v1099, %v1098
    %v1103 = vpack.c.b16 %v1101, %v1100
    %v1107 = vsel %vm179, %v1093, 0
    %1109 = vmatpush.bf16.msra.mxu0 0
    %1110 = vmatpush.bf16.msra.mxu0 0
    %1111 = vmatpush.bf16.msra.mxu0 0
    %1112 = vmatpush.bf16.msra.mxu0 0
    %1113 = vmatpush.bf16.msra.mxu0 0
    %1114 = vmatpush.bf16.msra.mxu0 0
    %1115 = vmatpush.bf16.msra.mxu0 %v1103
    %1116 = vmatpush.bf16.msra.mxu0 %v1102
    %1117 = vmatmul.bf16.gmra.mxu0 %v1107
    %v1118 = vpop.f32.mrf.mxu0
    %v1119 = vadd.f32 %v1089, %v1118
    %v1120 = vpop.f32.mrf.mxu0
    %1121 = vdwg.mxu0
    %1122 = vst [vmem:[#allocation5] sm:$0xff] %v1119
    // Predicated region
    $region34: #{tpu_custom_call.1} parent=1 // pred_check
      _
    $region35: #{tpu_custom_call.1} parent=1 // pred_check_branch
      %1124 = sbr.rel (0) target = $region37
    $region36: #{tpu_custom_call.1} parent=1 // pred_region
      %1126 = vsyncadd [#allocation4], 0
      %s1128 = sshll.u32 [#allocation5], 4
      %s1129 = int_to_ptr.vmem [resolvable:$true] %s1128
      %s1130 = sshll.u32 %s7, 4
      %s1131 = int_to_ptr.hbm [resolvable:$true] %s1130
      %1133 = dma.vmem_to_hbm [thread:$0]  %s1129, 128, %s1131, [#allocation4]
    $region37: #{tpu_custom_call.1} parent=1 // pred_fallthru
      _
    // Predicated region
    $region38: #{tpu_custom_call.1} parent=1 // pred_check
      _
    $region39: #{tpu_custom_call.1} parent=1 // pred_check_branch
      %1135 = sbr.rel (0) target = $region41
    $region40: #{tpu_custom_call.1} parent=1 // pred_region
      %1137 = dma.done [#allocation4], 128
    $region41: #{tpu_custom_call.1} parent=1 // pred_fallthru
      _
    %1138 = vsyncpa [#allocation3], 1
    %1139 = vsyncpa [#allocation4], 1

</llo_original>
